<compile_context>
chip_gen: v6e
topology: v6e:2x2x1
jax: 0.10.0
libtpu: 0.0.40
codegen_flags: <defaults>
</compile_context>

<pallas_src>
import functools

import jax
import jax.numpy as jnp
from jax.experimental import pallas as pl
from jax.experimental.pallas import tpu as pltpu


# --------------------------------------------------------------------------
# Fused kernel: all residual blocks + MLP head for ONE sequence (grid over B).
# --------------------------------------------------------------------------
def _res1d_kernel(*refs, identity_flags, mxu_dtype):
    o_ref = refs[-1]
    it = iter(refs[:-1])
    x_ref = next(it)

    h = x_ref[...].astype(jnp.float32)          # (L, C_in)
    L = h.shape[0]

    # Boundary masks for the zero-padded k=3 conv (hoisted; built once).
    pos = jax.lax.broadcasted_iota(jnp.int32, (L, 1), 0)
    mask_first = (pos != 0).astype(jnp.float32)        # row 0 has no left nbr
    mask_last = (pos != L - 1).astype(jnp.float32)     # row L-1 has no right nbr

    def conv3(h, w3_ref, bias):
        # w3_ref: (3*Cin, Cout), rows ordered [tap x[l-1], tap x[l], tap x[l+1]].
        h_m1 = pltpu.roll(h, shift=1, axis=0) * mask_first     # row l <- h[l-1]
        h_p1 = pltpu.roll(h, shift=L - 1, axis=0) * mask_last  # row l <- h[l+1]
        h3 = jnp.concatenate([h_m1, h, h_p1], axis=-1)         # (L, 3*Cin)
        return jnp.dot(h3.astype(mxu_dtype), w3_ref[...],
                       preferred_element_type=jnp.float32) + bias

    def layer_norm(h, gamma, beta):             # normalize over channel axis
        mu = jnp.mean(h, axis=-1, keepdims=True)
        var = jnp.mean(jnp.square(h - mu), axis=-1, keepdims=True)
        return (h - mu) * jax.lax.rsqrt(var + 1e-5) * gamma + beta

    for identity in identity_flags:
        w3_0, v0_ref, w3_1, v1_ref = [next(it) for _ in range(4)]
        v0 = v0_ref[...]                        # (3, hid): conv bias, ln g, ln b
        v1 = v1_ref[...]                        # (3, cout)
        z = conv3(h, w3_0, v0[0:1])
        z = jnp.maximum(layer_norm(z, v0[1:2], v0[2:3]), 0.0)
        z = conv3(z, w3_1, v1[0:1])
        z = layer_norm(z, v1[1:2], v1[2:3])
        if identity:
            res = h                             # torch.nn.Identity dim_mapper
        else:
            wm = next(it)                       # Linear(in, out, bias=False)
            res = jnp.dot(h.astype(mxu_dtype), wm[...],
                          preferred_element_type=jnp.float32)
        # TODO(synk): residual-path dropout omitted (p_dropout == 0.0 -> no-op).
        h = jnp.maximum(res + z, 0.0)

    # MLP head: Linear -> ReLU -> Linear (output channels zero-padded to 128
    # in the wrapper so this store is a full-width unmasked lane-dense vst).
    wm1, bm1, wm2, bm2 = [next(it) for _ in range(4)]
    z = jnp.maximum(
        jnp.dot(h.astype(mxu_dtype), wm1[...],
                preferred_element_type=jnp.float32) + bm1[...], 0.0)
    o_ref[...] = (jnp.dot(z.astype(mxu_dtype), wm2[...],
                          preferred_element_type=jnp.float32) + bm2[...])


# --------------------------------------------------------------------------
# Wrapper: grid over batch, weights shipped once (constant index maps),
# conv taps pre-packed to (3*Cin, Cout), MXU operands pre-cast to bf16.
# --------------------------------------------------------------------------
def res1d_forward(x, params, *, mxu_dtype=jnp.bfloat16):
    B, L, c_in = x.shape
    mlp = params["mlp"]
    c_out = mlp["w2"].shape[1]
    c_out_pad = ((c_out + 127) // 128) * 128    # lane-dense output store

    args = [x]
    in_specs = [pl.BlockSpec((None, L, c_in), lambda b: (b, 0, 0))]

    def add_const(a):                           # small 2-D constant, fetched once
        args.append(a)
        in_specs.append(pl.BlockSpec(a.shape, lambda b: (0, 0)))

    identity_flags = []
    for blk in params["blocks"]:
        cin, hid = blk["w0"].shape[1], blk["w0"].shape[2]
        cout = blk["w1"].shape[2]
        add_const(blk["w0"].reshape(3 * cin, hid).astype(mxu_dtype))
        add_const(jnp.concatenate([blk["b0"], blk["g0"], blk["be0"]], axis=0))
        add_const(blk["w1"].reshape(3 * hid, cout).astype(mxu_dtype))
        add_const(jnp.concatenate([blk["b1"], blk["g1"], blk["be1"]], axis=0))
        identity_flags.append(bool(blk["identity"]))
        if not blk["identity"]:
            add_const(blk["wm"].astype(mxu_dtype))

    H = mlp["w1"].shape[1]
    w2_pad = jnp.zeros((H, c_out_pad), jnp.float32).at[:, :c_out].set(mlp["w2"])
    b2_pad = jnp.zeros((1, c_out_pad), jnp.float32).at[:, :c_out].set(mlp["b2"])
    add_const(mlp["w1"].astype(mxu_dtype))
    add_const(mlp["b1"])
    add_const(w2_pad.astype(mxu_dtype))
    add_const(b2_pad)

    kernel = functools.partial(
        _res1d_kernel, identity_flags=tuple(identity_flags), mxu_dtype=mxu_dtype)

    y = pl.pallas_call(
        kernel,
        grid=(B,),
        out_shape=jax.ShapeDtypeStruct((B, L, c_out_pad), jnp.float32),
        in_specs=in_specs,
        out_specs=pl.BlockSpec((None, L, c_out_pad), lambda b: (b, 0, 0)),
        compiler_params=pltpu.CompilerParams(
            dimension_semantics=("parallel",)),   # shards batch across TCs (v7x)
    )(*args)
    return y[:, :, :c_out]


# --------------------------------------------------------------------------
# Parameter init (deterministic, synthetic) — conv weights stored as
# (k=3, C_in, C_out) == torch W[co, ci, k] transposed; tap 0 hits x[l-1].
# --------------------------------------------------------------------------
def init_res1d_params(key, in_channels, out_channels, nblocks, hidden_progression):
    params = {"blocks": []}
    cin = in_channels
    for kb in range(nblocks):
        hid = hidden_progression[kb]
        cout = hidden_progression[kb]
        key, k0, k1, k2, k3, k4 = jax.random.split(key, 6)
        blk = {
            "w0": 0.1 * jax.random.normal(k0, (3, cin, hid), jnp.float32),
            "b0": 0.1 * jax.random.normal(k1, (1, hid), jnp.float32),
            "g0": jnp.ones((1, hid), jnp.float32),
            "be0": jnp.zeros((1, hid), jnp.float32),
            "w1": 0.1 * jax.random.normal(k2, (3, hid, cout), jnp.float32),
            "b1": 0.1 * jax.random.normal(k3, (1, cout), jnp.float32),
            "g1": jnp.ones((1, cout), jnp.float32),
            "be1": jnp.zeros((1, cout), jnp.float32),
            "identity": cin == cout,
        }
        if not blk["identity"]:
            blk["wm"] = 0.1 * jax.random.normal(k4, (cin, cout), jnp.float32)
        params["blocks"].append(blk)
        cin = cout

    H = hidden_progression[nblocks - 1]
    key, k1, k2, k3, k4 = jax.random.split(key, 5)
    params["mlp"] = {
        "w1": 0.1 * jax.random.normal(k1, (H, H), jnp.float32),
        "b1": 0.1 * jax.random.normal(k2, (1, H), jnp.float32),
        "w2": 0.1 * jax.random.normal(k3, (H, out_channels), jnp.float32),
        "b2": 0.1 * jax.random.normal(k4, (1, out_channels), jnp.float32),
    }
    return params


# --------------------------------------------------------------------------
# Pure-JAX f32 reference (matches the PyTorch module) for a sanity check.
# --------------------------------------------------------------------------
def res1d_reference(x, params):
    _, L, _ = x.shape

    def conv3_ref(h, w, b):                  # h: (B, L, C), w: (3, C, Co)
        h_m1 = jnp.pad(h, ((0, 0), (1, 0), (0, 0)))[:, :L, :]
        h_p1 = jnp.pad(h, ((0, 0), (0, 1), (0, 0)))[:, 1:, :]
        return (jnp.einsum("blc,co->blo", h_m1, w[0])
                + jnp.einsum("blc,co->blo", h, w[1])
                + jnp.einsum("blc,co->blo", h_p1, w[2]) + b)

    def ln_ref(h, g, b):
        mu = h.mean(-1, keepdims=True)
        var = ((h - mu) ** 2).mean(-1, keepdims=True)
        return (h - mu) * jax.lax.rsqrt(var + 1e-5) * g + b

    h = x
    for blk in params["blocks"]:
        z = jnp.maximum(
            ln_ref(conv3_ref(h, blk["w0"], blk["b0"]), blk["g0"], blk["be0"]), 0.0)
        z = ln_ref(conv3_ref(z, blk["w1"], blk["b1"]), blk["g1"], blk["be1"])
        res = h if blk["identity"] else jnp.einsum("blc,co->blo", h, blk["wm"])
        h = jnp.maximum(res + z, 0.0)
    m = params["mlp"]
    z = jnp.maximum(jnp.einsum("blc,co->blo", h, m["w1"]) + m["b1"], 0.0)
    return jnp.einsum("blc,co->blo", z, m["w2"]) + m["b2"]


if __name__ == "__main__":
    # in_channels=4, out_channels=6, nblocks=3, hidden=(8, 8, 16)
    # (block 1 is an identity-mapper block, blocks 0/2 use the linear mapper).
    B, L, C_IN, C_OUT = 2, 16, 4, 6
    HIDDEN = (8, 8, 16)
    NBLOCKS = 3

    key = jax.random.PRNGKey(0)
    kx, kp = jax.random.split(key)
    x = jax.random.normal(kx, (B, L, C_IN), jnp.float32)   # (batch, seq, channels)
    params = init_res1d_params(kp, C_IN, C_OUT, NBLOCKS, HIDDEN)

    y = res1d_forward(x, params)
    jax.block_until_ready(y)
    assert y.shape == (B, L, C_OUT), y.shape

    # bf16 MXU operands -> loosened tolerance vs the f32 reference.
    y_ref = res1d_reference(x, params)
    max_err = float(jnp.max(jnp.abs(y - y_ref)))
    assert jnp.allclose(y, y_ref, rtol=5e-2, atol=5e-2), max_err

    print("KERNEL_OK")
</pallas_src>

<mosaic_0001>
module attributes {stable_mosaic.version = 11 : i64} {
  func.func @_res1d_kernel(%arg0: i32, %arg1: memref<1x16x4xf32, #tpu.memory_space<vmem>>, %arg2: memref<12x8xbf16, #tpu.memory_space<vmem>>, %arg3: memref<3x8xf32, #tpu.memory_space<vmem>>, %arg4: memref<24x8xbf16, #tpu.memory_space<vmem>>, %arg5: memref<3x8xf32, #tpu.memory_space<vmem>>, %arg6: memref<4x8xbf16, #tpu.memory_space<vmem>>, %arg7: memref<24x8xbf16, #tpu.memory_space<vmem>>, %arg8: memref<3x8xf32, #tpu.memory_space<vmem>>, %arg9: memref<24x8xbf16, #tpu.memory_space<vmem>>, %arg10: memref<3x8xf32, #tpu.memory_space<vmem>>, %arg11: memref<24x16xbf16, #tpu.memory_space<vmem>>, %arg12: memref<3x16xf32, #tpu.memory_space<vmem>>, %arg13: memref<48x16xbf16, #tpu.memory_space<vmem>>, %arg14: memref<3x16xf32, #tpu.memory_space<vmem>>, %arg15: memref<8x16xbf16, #tpu.memory_space<vmem>>, %arg16: memref<16x16xbf16, #tpu.memory_space<vmem>>, %arg17: memref<1x16xf32, #tpu.memory_space<vmem>>, %arg18: memref<16x128xbf16, #tpu.memory_space<vmem>>, %arg19: memref<1x128xf32, #tpu.memory_space<vmem>>, %arg20: memref<1x16x128xf32, #tpu.memory_space<vmem>>) attributes {dimension_semantics = [#tpu.dimension_semantics<parallel>], iteration_bounds = array<i64: 2>, scalar_prefetch = 0 : i64, scratch_operands = 0 : i64, tpu.core_type = #tpu.core_type<tc>, window_params = [{transform_indices = @transform_0, window_bounds = array<i64: 1, 16, 4>}, {pipeline_mode = #tpu.pipeline_mode<synchronous>, transform_indices = @transform_1, window_bounds = array<i64: 12, 8>}, {pipeline_mode = #tpu.pipeline_mode<synchronous>, transform_indices = @transform_2, window_bounds = array<i64: 3, 8>}, {pipeline_mode = #tpu.pipeline_mode<synchronous>, transform_indices = @transform_3, window_bounds = array<i64: 24, 8>}, {pipeline_mode = #tpu.pipeline_mode<synchronous>, transform_indices = @transform_4, window_bounds = array<i64: 3, 8>}, {pipeline_mode = #tpu.pipeline_mode<synchronous>, transform_indices = @transform_5, window_bounds = array<i64: 4, 8>}, {pipeline_mode = #tpu.pipeline_mode<synchronous>, transform_indices = @transform_6, window_bounds = array<i64: 24, 8>}, {pipeline_mode = #tpu.pipeline_mode<synchronous>, transform_indices = @transform_7, window_bounds = array<i64: 3, 8>}, {pipeline_mode = #tpu.pipeline_mode<synchronous>, transform_indices = @transform_8, window_bounds = array<i64: 24, 8>}, {pipeline_mode = #tpu.pipeline_mode<synchronous>, transform_indices = @transform_9, window_bounds = array<i64: 3, 8>}, {pipeline_mode = #tpu.pipeline_mode<synchronous>, transform_indices = @transform_10, window_bounds = array<i64: 24, 16>}, {pipeline_mode = #tpu.pipeline_mode<synchronous>, transform_indices = @transform_11, window_bounds = array<i64: 3, 16>}, {pipeline_mode = #tpu.pipeline_mode<synchronous>, transform_indices = @transform_12, window_bounds = array<i64: 48, 16>}, {pipeline_mode = #tpu.pipeline_mode<synchronous>, transform_indices = @transform_13, window_bounds = array<i64: 3, 16>}, {pipeline_mode = #tpu.pipeline_mode<synchronous>, transform_indices = @transform_14, window_bounds = array<i64: 8, 16>}, {pipeline_mode = #tpu.pipeline_mode<synchronous>, transform_indices = @transform_15, window_bounds = array<i64: 16, 16>}, {pipeline_mode = #tpu.pipeline_mode<synchronous>, transform_indices = @transform_16, window_bounds = array<i64: 1, 16>}, {pipeline_mode = #tpu.pipeline_mode<synchronous>, transform_indices = @transform_17, window_bounds = array<i64: 16, 128>}, {pipeline_mode = #tpu.pipeline_mode<synchronous>, transform_indices = @transform_18, window_bounds = array<i64: 1, 128>}, {transform_indices = @transform_19, window_bounds = array<i64: 1, 16, 128>}]} {
    %c0 = arith.constant 0 : index
    %c0_0 = arith.constant 0 : index
    %c0_1 = arith.constant 0 : index
    %0 = vector.load %arg1[%c0, %c0_0, %c0_1] : memref<1x16x4xf32, #tpu.memory_space<vmem>>, vector<1x16x4xf32>
    %1 = vector.shape_cast %0 : vector<1x16x4xf32> to vector<16x4xf32>
    %2 = tpu.iota {dimensions = array<i32: 0>} : vector<16x1xi32>
    %c0_i32 = arith.constant 0 : i32
    %3 = vector.broadcast %c0_i32 : i32 to vector<16x1xi32>
    %4 = arith.cmpi ne, %2, %3 : vector<16x1xi32>
    %5 = arith.extui %4 : vector<16x1xi1> to vector<16x1xi32>
    %6 = arith.sitofp %5 : vector<16x1xi32> to vector<16x1xf32>
    %c15_i32 = arith.constant 15 : i32
    %7 = vector.broadcast %c15_i32 : i32 to vector<16x1xi32>
    %8 = arith.cmpi ne, %2, %7 : vector<16x1xi32>
    %9 = arith.extui %8 : vector<16x1xi1> to vector<16x1xi32>
    %10 = arith.sitofp %9 : vector<16x1xi32> to vector<16x1xf32>
    %c0_2 = arith.constant 0 : index
    %c0_3 = arith.constant 0 : index
    %11 = vector.load %arg3[%c0_2, %c0_3] : memref<3x8xf32, #tpu.memory_space<vmem>>, vector<3x8xf32>
    %c0_4 = arith.constant 0 : index
    %c0_5 = arith.constant 0 : index
    %12 = vector.load %arg5[%c0_4, %c0_5] : memref<3x8xf32, #tpu.memory_space<vmem>>, vector<3x8xf32>
    %13 = vector.extract_strided_slice %11 {offsets = [0, 0], sizes = [1, 8], strides = [1, 1]} : vector<3x8xf32> to vector<1x8xf32>
    %c1_i32 = arith.constant 1 : i32
    %14 = tpu.dynamic_rotate %1 by %c1_i32 dim 0 : vector<16x4xf32>, i32 -> vector<16x4xf32>
    %15 = vector.broadcast %6 : vector<16x1xf32> to vector<16x4xf32>
    %16 = arith.mulf %14, %15 : vector<16x4xf32>
    %c15_i32_6 = arith.constant 15 : i32
    %17 = tpu.dynamic_rotate %1 by %c15_i32_6 dim 0 : vector<16x4xf32>, i32 -> vector<16x4xf32>
    %18 = vector.broadcast %10 : vector<16x1xf32> to vector<16x4xf32>
    %19 = arith.mulf %17, %18 : vector<16x4xf32>
    %20 = tpu.concatenate %16, %1, %19 in 1 : vector<16x4xf32>, vector<16x4xf32>, vector<16x4xf32> -> vector<16x12xf32>
    %21 = arith.truncf %20 : vector<16x12xf32> to vector<16x12xbf16>
    %c0_7 = arith.constant 0 : index
    %c0_8 = arith.constant 0 : index
    %22 = vector.load %arg2[%c0_7, %c0_8] : memref<12x8xbf16, #tpu.memory_space<vmem>>, vector<12x8xbf16>
    %cst = arith.constant dense<0.000000e+00> : vector<16x8xf32>
    %23 = tpu.matmul %21, %22, %cst {dimension_numbers = #tpu.dot_dimension_numbers<[1], [0], [0], [1], [0, 0, 1, 1], [], []>} : vector<16x12xbf16>, vector<12x8xbf16>, vector<16x8xf32> -> vector<16x8xf32>
    %24 = vector.broadcast %13 : vector<1x8xf32> to vector<16x8xf32>
    %25 = arith.addf %23, %24 : vector<16x8xf32>
    %26 = vector.extract_strided_slice %11 {offsets = [1, 0], sizes = [1, 8], strides = [1, 1]} : vector<3x8xf32> to vector<1x8xf32>
    %27 = vector.extract_strided_slice %11 {offsets = [2, 0], sizes = [1, 8], strides = [1, 1]} : vector<3x8xf32> to vector<1x8xf32>
    %cst_9 = arith.constant dense<0.000000e+00> : vector<16xf32>
    %28 = vector.multi_reduction <add>, %25, %cst_9 [1] : vector<16x8xf32> to vector<16xf32>
    %29 = vector.shape_cast %28 : vector<16xf32> to vector<16x1xf32>
    %cst_10 = arith.constant 8.000000e+00 : f32
    %30 = vector.broadcast %cst_10 : f32 to vector<16x1xf32>
    %31 = arith.divf %29, %30 : vector<16x1xf32>
    %32 = vector.broadcast %31 : vector<16x1xf32> to vector<16x8xf32>
    %33 = arith.subf %25, %32 : vector<16x8xf32>
    %34 = arith.mulf %33, %33 : vector<16x8xf32>
    %cst_11 = arith.constant dense<0.000000e+00> : vector<16xf32>
    %35 = vector.multi_reduction <add>, %34, %cst_11 [1] : vector<16x8xf32> to vector<16xf32>
    %36 = vector.shape_cast %35 : vector<16xf32> to vector<16x1xf32>
    %cst_12 = arith.constant 8.000000e+00 : f32
    %37 = vector.broadcast %cst_12 : f32 to vector<16x1xf32>
    %38 = arith.divf %36, %37 : vector<16x1xf32>
    %39 = vector.broadcast %31 : vector<16x1xf32> to vector<16x8xf32>
    %40 = arith.subf %25, %39 : vector<16x8xf32>
    %cst_13 = arith.constant 9.99999974E-6 : f32
    %41 = vector.broadcast %cst_13 : f32 to vector<16x1xf32>
    %42 = arith.addf %38, %41 : vector<16x1xf32>
    %43 = math.rsqrt %42 : vector<16x1xf32>
    %44 = vector.broadcast %43 : vector<16x1xf32> to vector<16x8xf32>
    %45 = arith.mulf %40, %44 : vector<16x8xf32>
    %46 = vector.broadcast %26 : vector<1x8xf32> to vector<16x8xf32>
    %47 = arith.mulf %45, %46 : vector<16x8xf32>
    %48 = vector.broadcast %27 : vector<1x8xf32> to vector<16x8xf32>
    %49 = arith.addf %47, %48 : vector<16x8xf32>
    %cst_14 = arith.constant 0.000000e+00 : f32
    %50 = vector.broadcast %cst_14 : f32 to vector<16x8xf32>
    %51 = arith.maximumf %49, %50 : vector<16x8xf32>
    %52 = vector.extract_strided_slice %12 {offsets = [0, 0], sizes = [1, 8], strides = [1, 1]} : vector<3x8xf32> to vector<1x8xf32>
    %c1_i32_15 = arith.constant 1 : i32
    %53 = tpu.dynamic_rotate %51 by %c1_i32_15 dim 0 : vector<16x8xf32>, i32 -> vector<16x8xf32>
    %54 = vector.broadcast %6 : vector<16x1xf32> to vector<16x8xf32>
    %55 = arith.mulf %53, %54 : vector<16x8xf32>
    %c15_i32_16 = arith.constant 15 : i32
    %56 = tpu.dynamic_rotate %51 by %c15_i32_16 dim 0 : vector<16x8xf32>, i32 -> vector<16x8xf32>
    %57 = vector.broadcast %10 : vector<16x1xf32> to vector<16x8xf32>
    %58 = arith.mulf %56, %57 : vector<16x8xf32>
    %59 = tpu.concatenate %55, %51, %58 in 1 : vector<16x8xf32>, vector<16x8xf32>, vector<16x8xf32> -> vector<16x24xf32>
    %60 = arith.truncf %59 : vector<16x24xf32> to vector<16x24xbf16>
    %c0_17 = arith.constant 0 : index
    %c0_18 = arith.constant 0 : index
    %61 = vector.load %arg4[%c0_17, %c0_18] : memref<24x8xbf16, #tpu.memory_space<vmem>>, vector<24x8xbf16>
    %cst_19 = arith.constant dense<0.000000e+00> : vector<16x8xf32>
    %62 = tpu.matmul %60, %61, %cst_19 {dimension_numbers = #tpu.dot_dimension_numbers<[1], [0], [0], [1], [0, 0, 1, 1], [], []>} : vector<16x24xbf16>, vector<24x8xbf16>, vector<16x8xf32> -> vector<16x8xf32>
    %63 = vector.broadcast %52 : vector<1x8xf32> to vector<16x8xf32>
    %64 = arith.addf %62, %63 : vector<16x8xf32>
    %65 = vector.extract_strided_slice %12 {offsets = [1, 0], sizes = [1, 8], strides = [1, 1]} : vector<3x8xf32> to vector<1x8xf32>
    %66 = vector.extract_strided_slice %12 {offsets = [2, 0], sizes = [1, 8], strides = [1, 1]} : vector<3x8xf32> to vector<1x8xf32>
    %cst_20 = arith.constant dense<0.000000e+00> : vector<16xf32>
    %67 = vector.multi_reduction <add>, %64, %cst_20 [1] : vector<16x8xf32> to vector<16xf32>
    %68 = vector.shape_cast %67 : vector<16xf32> to vector<16x1xf32>
    %cst_21 = arith.constant 8.000000e+00 : f32
    %69 = vector.broadcast %cst_21 : f32 to vector<16x1xf32>
    %70 = arith.divf %68, %69 : vector<16x1xf32>
    %71 = vector.broadcast %70 : vector<16x1xf32> to vector<16x8xf32>
    %72 = arith.subf %64, %71 : vector<16x8xf32>
    %73 = arith.mulf %72, %72 : vector<16x8xf32>
    %cst_22 = arith.constant dense<0.000000e+00> : vector<16xf32>
    %74 = vector.multi_reduction <add>, %73, %cst_22 [1] : vector<16x8xf32> to vector<16xf32>
    %75 = vector.shape_cast %74 : vector<16xf32> to vector<16x1xf32>
    %cst_23 = arith.constant 8.000000e+00 : f32
    %76 = vector.broadcast %cst_23 : f32 to vector<16x1xf32>
    %77 = arith.divf %75, %76 : vector<16x1xf32>
    %78 = vector.broadcast %70 : vector<16x1xf32> to vector<16x8xf32>
    %79 = arith.subf %64, %78 : vector<16x8xf32>
    %cst_24 = arith.constant 9.99999974E-6 : f32
    %80 = vector.broadcast %cst_24 : f32 to vector<16x1xf32>
    %81 = arith.addf %77, %80 : vector<16x1xf32>
    %82 = math.rsqrt %81 : vector<16x1xf32>
    %83 = vector.broadcast %82 : vector<16x1xf32> to vector<16x8xf32>
    %84 = arith.mulf %79, %83 : vector<16x8xf32>
    %85 = vector.broadcast %65 : vector<1x8xf32> to vector<16x8xf32>
    %86 = arith.mulf %84, %85 : vector<16x8xf32>
    %87 = vector.broadcast %66 : vector<1x8xf32> to vector<16x8xf32>
    %88 = arith.addf %86, %87 : vector<16x8xf32>
    %89 = arith.truncf %1 : vector<16x4xf32> to vector<16x4xbf16>
    %c0_25 = arith.constant 0 : index
    %c0_26 = arith.constant 0 : index
    %90 = vector.load %arg6[%c0_25, %c0_26] : memref<4x8xbf16, #tpu.memory_space<vmem>>, vector<4x8xbf16>
    %cst_27 = arith.constant dense<0.000000e+00> : vector<16x8xf32>
    %91 = tpu.matmul %89, %90, %cst_27 {dimension_numbers = #tpu.dot_dimension_numbers<[1], [0], [0], [1], [0, 0, 1, 1], [], []>} : vector<16x4xbf16>, vector<4x8xbf16>, vector<16x8xf32> -> vector<16x8xf32>
    %92 = arith.addf %91, %88 : vector<16x8xf32>
    %cst_28 = arith.constant 0.000000e+00 : f32
    %93 = vector.broadcast %cst_28 : f32 to vector<16x8xf32>
    %94 = arith.maximumf %92, %93 : vector<16x8xf32>
    %c0_29 = arith.constant 0 : index
    %c0_30 = arith.constant 0 : index
    %95 = vector.load %arg8[%c0_29, %c0_30] : memref<3x8xf32, #tpu.memory_space<vmem>>, vector<3x8xf32>
    %c0_31 = arith.constant 0 : index
    %c0_32 = arith.constant 0 : index
    %96 = vector.load %arg10[%c0_31, %c0_32] : memref<3x8xf32, #tpu.memory_space<vmem>>, vector<3x8xf32>
    %97 = vector.extract_strided_slice %95 {offsets = [0, 0], sizes = [1, 8], strides = [1, 1]} : vector<3x8xf32> to vector<1x8xf32>
    %c1_i32_33 = arith.constant 1 : i32
    %98 = tpu.dynamic_rotate %94 by %c1_i32_33 dim 0 : vector<16x8xf32>, i32 -> vector<16x8xf32>
    %99 = vector.broadcast %6 : vector<16x1xf32> to vector<16x8xf32>
    %100 = arith.mulf %98, %99 : vector<16x8xf32>
    %c15_i32_34 = arith.constant 15 : i32
    %101 = tpu.dynamic_rotate %94 by %c15_i32_34 dim 0 : vector<16x8xf32>, i32 -> vector<16x8xf32>
    %102 = vector.broadcast %10 : vector<16x1xf32> to vector<16x8xf32>
    %103 = arith.mulf %101, %102 : vector<16x8xf32>
    %104 = tpu.concatenate %100, %94, %103 in 1 : vector<16x8xf32>, vector<16x8xf32>, vector<16x8xf32> -> vector<16x24xf32>
    %105 = arith.truncf %104 : vector<16x24xf32> to vector<16x24xbf16>
    %c0_35 = arith.constant 0 : index
    %c0_36 = arith.constant 0 : index
    %106 = vector.load %arg7[%c0_35, %c0_36] : memref<24x8xbf16, #tpu.memory_space<vmem>>, vector<24x8xbf16>
    %cst_37 = arith.constant dense<0.000000e+00> : vector<16x8xf32>
    %107 = tpu.matmul %105, %106, %cst_37 {dimension_numbers = #tpu.dot_dimension_numbers<[1], [0], [0], [1], [0, 0, 1, 1], [], []>} : vector<16x24xbf16>, vector<24x8xbf16>, vector<16x8xf32> -> vector<16x8xf32>
    %108 = vector.broadcast %97 : vector<1x8xf32> to vector<16x8xf32>
    %109 = arith.addf %107, %108 : vector<16x8xf32>
    %110 = vector.extract_strided_slice %95 {offsets = [1, 0], sizes = [1, 8], strides = [1, 1]} : vector<3x8xf32> to vector<1x8xf32>
    %111 = vector.extract_strided_slice %95 {offsets = [2, 0], sizes = [1, 8], strides = [1, 1]} : vector<3x8xf32> to vector<1x8xf32>
    %cst_38 = arith.constant dense<0.000000e+00> : vector<16xf32>
    %112 = vector.multi_reduction <add>, %109, %cst_38 [1] : vector<16x8xf32> to vector<16xf32>
    %113 = vector.shape_cast %112 : vector<16xf32> to vector<16x1xf32>
    %cst_39 = arith.constant 8.000000e+00 : f32
    %114 = vector.broadcast %cst_39 : f32 to vector<16x1xf32>
    %115 = arith.divf %113, %114 : vector<16x1xf32>
    %116 = vector.broadcast %115 : vector<16x1xf32> to vector<16x8xf32>
    %117 = arith.subf %109, %116 : vector<16x8xf32>
    %118 = arith.mulf %117, %117 : vector<16x8xf32>
    %cst_40 = arith.constant dense<0.000000e+00> : vector<16xf32>
    %119 = vector.multi_reduction <add>, %118, %cst_40 [1] : vector<16x8xf32> to vector<16xf32>
    %120 = vector.shape_cast %119 : vector<16xf32> to vector<16x1xf32>
    %cst_41 = arith.constant 8.000000e+00 : f32
    %121 = vector.broadcast %cst_41 : f32 to vector<16x1xf32>
    %122 = arith.divf %120, %121 : vector<16x1xf32>
    %123 = vector.broadcast %115 : vector<16x1xf32> to vector<16x8xf32>
    %124 = arith.subf %109, %123 : vector<16x8xf32>
    %cst_42 = arith.constant 9.99999974E-6 : f32
    %125 = vector.broadcast %cst_42 : f32 to vector<16x1xf32>
    %126 = arith.addf %122, %125 : vector<16x1xf32>
    %127 = math.rsqrt %126 : vector<16x1xf32>
    %128 = vector.broadcast %127 : vector<16x1xf32> to vector<16x8xf32>
    %129 = arith.mulf %124, %128 : vector<16x8xf32>
    %130 = vector.broadcast %110 : vector<1x8xf32> to vector<16x8xf32>
    %131 = arith.mulf %129, %130 : vector<16x8xf32>
    %132 = vector.broadcast %111 : vector<1x8xf32> to vector<16x8xf32>
    %133 = arith.addf %131, %132 : vector<16x8xf32>
    %cst_43 = arith.constant 0.000000e+00 : f32
    %134 = vector.broadcast %cst_43 : f32 to vector<16x8xf32>
    %135 = arith.maximumf %133, %134 : vector<16x8xf32>
    %136 = vector.extract_strided_slice %96 {offsets = [0, 0], sizes = [1, 8], strides = [1, 1]} : vector<3x8xf32> to vector<1x8xf32>
    %c1_i32_44 = arith.constant 1 : i32
    %137 = tpu.dynamic_rotate %135 by %c1_i32_44 dim 0 : vector<16x8xf32>, i32 -> vector<16x8xf32>
    %138 = vector.broadcast %6 : vector<16x1xf32> to vector<16x8xf32>
    %139 = arith.mulf %137, %138 : vector<16x8xf32>
    %c15_i32_45 = arith.constant 15 : i32
    %140 = tpu.dynamic_rotate %135 by %c15_i32_45 dim 0 : vector<16x8xf32>, i32 -> vector<16x8xf32>
    %141 = vector.broadcast %10 : vector<16x1xf32> to vector<16x8xf32>
    %142 = arith.mulf %140, %141 : vector<16x8xf32>
    %143 = tpu.concatenate %139, %135, %142 in 1 : vector<16x8xf32>, vector<16x8xf32>, vector<16x8xf32> -> vector<16x24xf32>
    %144 = arith.truncf %143 : vector<16x24xf32> to vector<16x24xbf16>
    %c0_46 = arith.constant 0 : index
    %c0_47 = arith.constant 0 : index
    %145 = vector.load %arg9[%c0_46, %c0_47] : memref<24x8xbf16, #tpu.memory_space<vmem>>, vector<24x8xbf16>
    %cst_48 = arith.constant dense<0.000000e+00> : vector<16x8xf32>
    %146 = tpu.matmul %144, %145, %cst_48 {dimension_numbers = #tpu.dot_dimension_numbers<[1], [0], [0], [1], [0, 0, 1, 1], [], []>} : vector<16x24xbf16>, vector<24x8xbf16>, vector<16x8xf32> -> vector<16x8xf32>
    %147 = vector.broadcast %136 : vector<1x8xf32> to vector<16x8xf32>
    %148 = arith.addf %146, %147 : vector<16x8xf32>
    %149 = vector.extract_strided_slice %96 {offsets = [1, 0], sizes = [1, 8], strides = [1, 1]} : vector<3x8xf32> to vector<1x8xf32>
    %150 = vector.extract_strided_slice %96 {offsets = [2, 0], sizes = [1, 8], strides = [1, 1]} : vector<3x8xf32> to vector<1x8xf32>
    %cst_49 = arith.constant dense<0.000000e+00> : vector<16xf32>
    %151 = vector.multi_reduction <add>, %148, %cst_49 [1] : vector<16x8xf32> to vector<16xf32>
    %152 = vector.shape_cast %151 : vector<16xf32> to vector<16x1xf32>
    %cst_50 = arith.constant 8.000000e+00 : f32
    %153 = vector.broadcast %cst_50 : f32 to vector<16x1xf32>
    %154 = arith.divf %152, %153 : vector<16x1xf32>
    %155 = vector.broadcast %154 : vector<16x1xf32> to vector<16x8xf32>
    %156 = arith.subf %148, %155 : vector<16x8xf32>
    %157 = arith.mulf %156, %156 : vector<16x8xf32>
    %cst_51 = arith.constant dense<0.000000e+00> : vector<16xf32>
    %158 = vector.multi_reduction <add>, %157, %cst_51 [1] : vector<16x8xf32> to vector<16xf32>
    %159 = vector.shape_cast %158 : vector<16xf32> to vector<16x1xf32>
    %cst_52 = arith.constant 8.000000e+00 : f32
    %160 = vector.broadcast %cst_52 : f32 to vector<16x1xf32>
    %161 = arith.divf %159, %160 : vector<16x1xf32>
    %162 = vector.broadcast %154 : vector<16x1xf32> to vector<16x8xf32>
    %163 = arith.subf %148, %162 : vector<16x8xf32>
    %cst_53 = arith.constant 9.99999974E-6 : f32
    %164 = vector.broadcast %cst_53 : f32 to vector<16x1xf32>
    %165 = arith.addf %161, %164 : vector<16x1xf32>
    %166 = math.rsqrt %165 : vector<16x1xf32>
    %167 = vector.broadcast %166 : vector<16x1xf32> to vector<16x8xf32>
    %168 = arith.mulf %163, %167 : vector<16x8xf32>
    %169 = vector.broadcast %149 : vector<1x8xf32> to vector<16x8xf32>
    %170 = arith.mulf %168, %169 : vector<16x8xf32>
    %171 = vector.broadcast %150 : vector<1x8xf32> to vector<16x8xf32>
    %172 = arith.addf %170, %171 : vector<16x8xf32>
    %173 = arith.addf %94, %172 : vector<16x8xf32>
    %cst_54 = arith.constant 0.000000e+00 : f32
    %174 = vector.broadcast %cst_54 : f32 to vector<16x8xf32>
    %175 = arith.maximumf %173, %174 : vector<16x8xf32>
    %c0_55 = arith.constant 0 : index
    %c0_56 = arith.constant 0 : index
    %176 = vector.load %arg12[%c0_55, %c0_56] : memref<3x16xf32, #tpu.memory_space<vmem>>, vector<3x16xf32>
    %c0_57 = arith.constant 0 : index
    %c0_58 = arith.constant 0 : index
    %177 = vector.load %arg14[%c0_57, %c0_58] : memref<3x16xf32, #tpu.memory_space<vmem>>, vector<3x16xf32>
    %178 = vector.extract_strided_slice %176 {offsets = [0, 0], sizes = [1, 16], strides = [1, 1]} : vector<3x16xf32> to vector<1x16xf32>
    %c1_i32_59 = arith.constant 1 : i32
    %179 = tpu.dynamic_rotate %175 by %c1_i32_59 dim 0 : vector<16x8xf32>, i32 -> vector<16x8xf32>
    %180 = vector.broadcast %6 : vector<16x1xf32> to vector<16x8xf32>
    %181 = arith.mulf %179, %180 : vector<16x8xf32>
    %c15_i32_60 = arith.constant 15 : i32
    %182 = tpu.dynamic_rotate %175 by %c15_i32_60 dim 0 : vector<16x8xf32>, i32 -> vector<16x8xf32>
    %183 = vector.broadcast %10 : vector<16x1xf32> to vector<16x8xf32>
    %184 = arith.mulf %182, %183 : vector<16x8xf32>
    %185 = tpu.concatenate %181, %175, %184 in 1 : vector<16x8xf32>, vector<16x8xf32>, vector<16x8xf32> -> vector<16x24xf32>
    %186 = arith.truncf %185 : vector<16x24xf32> to vector<16x24xbf16>
    %c0_61 = arith.constant 0 : index
    %c0_62 = arith.constant 0 : index
    %187 = vector.load %arg11[%c0_61, %c0_62] : memref<24x16xbf16, #tpu.memory_space<vmem>>, vector<24x16xbf16>
    %cst_63 = arith.constant dense<0.000000e+00> : vector<16x16xf32>
    %188 = tpu.matmul %186, %187, %cst_63 {dimension_numbers = #tpu.dot_dimension_numbers<[1], [0], [0], [1], [0, 0, 1, 1], [], []>} : vector<16x24xbf16>, vector<24x16xbf16>, vector<16x16xf32> -> vector<16x16xf32>
    %189 = vector.broadcast %178 : vector<1x16xf32> to vector<16x16xf32>
    %190 = arith.addf %188, %189 : vector<16x16xf32>
    %191 = vector.extract_strided_slice %176 {offsets = [1, 0], sizes = [1, 16], strides = [1, 1]} : vector<3x16xf32> to vector<1x16xf32>
    %192 = vector.extract_strided_slice %176 {offsets = [2, 0], sizes = [1, 16], strides = [1, 1]} : vector<3x16xf32> to vector<1x16xf32>
    %cst_64 = arith.constant dense<0.000000e+00> : vector<16xf32>
    %193 = vector.multi_reduction <add>, %190, %cst_64 [1] : vector<16x16xf32> to vector<16xf32>
    %194 = vector.shape_cast %193 : vector<16xf32> to vector<16x1xf32>
    %cst_65 = arith.constant 1.600000e+01 : f32
    %195 = vector.broadcast %cst_65 : f32 to vector<16x1xf32>
    %196 = arith.divf %194, %195 : vector<16x1xf32>
    %197 = vector.broadcast %196 : vector<16x1xf32> to vector<16x16xf32>
    %198 = arith.subf %190, %197 : vector<16x16xf32>
    %199 = arith.mulf %198, %198 : vector<16x16xf32>
    %cst_66 = arith.constant dense<0.000000e+00> : vector<16xf32>
    %200 = vector.multi_reduction <add>, %199, %cst_66 [1] : vector<16x16xf32> to vector<16xf32>
    %201 = vector.shape_cast %200 : vector<16xf32> to vector<16x1xf32>
    %cst_67 = arith.constant 1.600000e+01 : f32
    %202 = vector.broadcast %cst_67 : f32 to vector<16x1xf32>
    %203 = arith.divf %201, %202 : vector<16x1xf32>
    %204 = vector.broadcast %196 : vector<16x1xf32> to vector<16x16xf32>
    %205 = arith.subf %190, %204 : vector<16x16xf32>
    %cst_68 = arith.constant 9.99999974E-6 : f32
    %206 = vector.broadcast %cst_68 : f32 to vector<16x1xf32>
    %207 = arith.addf %203, %206 : vector<16x1xf32>
    %208 = math.rsqrt %207 : vector<16x1xf32>
    %209 = vector.broadcast %208 : vector<16x1xf32> to vector<16x16xf32>
    %210 = arith.mulf %205, %209 : vector<16x16xf32>
    %211 = vector.broadcast %191 : vector<1x16xf32> to vector<16x16xf32>
    %212 = arith.mulf %210, %211 : vector<16x16xf32>
    %213 = vector.broadcast %192 : vector<1x16xf32> to vector<16x16xf32>
    %214 = arith.addf %212, %213 : vector<16x16xf32>
    %cst_69 = arith.constant 0.000000e+00 : f32
    %215 = vector.broadcast %cst_69 : f32 to vector<16x16xf32>
    %216 = arith.maximumf %214, %215 : vector<16x16xf32>
    %217 = vector.extract_strided_slice %177 {offsets = [0, 0], sizes = [1, 16], strides = [1, 1]} : vector<3x16xf32> to vector<1x16xf32>
    %c1_i32_70 = arith.constant 1 : i32
    %218 = tpu.dynamic_rotate %216 by %c1_i32_70 dim 0 : vector<16x16xf32>, i32 -> vector<16x16xf32>
    %219 = vector.broadcast %6 : vector<16x1xf32> to vector<16x16xf32>
    %220 = arith.mulf %218, %219 : vector<16x16xf32>
    %c15_i32_71 = arith.constant 15 : i32
    %221 = tpu.dynamic_rotate %216 by %c15_i32_71 dim 0 : vector<16x16xf32>, i32 -> vector<16x16xf32>
    %222 = vector.broadcast %10 : vector<16x1xf32> to vector<16x16xf32>
    %223 = arith.mulf %221, %222 : vector<16x16xf32>
    %224 = tpu.concatenate %220, %216, %223 in 1 : vector<16x16xf32>, vector<16x16xf32>, vector<16x16xf32> -> vector<16x48xf32>
    %225 = arith.truncf %224 : vector<16x48xf32> to vector<16x48xbf16>
    %c0_72 = arith.constant 0 : index
    %c0_73 = arith.constant 0 : index
    %226 = vector.load %arg13[%c0_72, %c0_73] : memref<48x16xbf16, #tpu.memory_space<vmem>>, vector<48x16xbf16>
    %cst_74 = arith.constant dense<0.000000e+00> : vector<16x16xf32>
    %227 = tpu.matmul %225, %226, %cst_74 {dimension_numbers = #tpu.dot_dimension_numbers<[1], [0], [0], [1], [0, 0, 1, 1], [], []>} : vector<16x48xbf16>, vector<48x16xbf16>, vector<16x16xf32> -> vector<16x16xf32>
    %228 = vector.broadcast %217 : vector<1x16xf32> to vector<16x16xf32>
    %229 = arith.addf %227, %228 : vector<16x16xf32>
    %230 = vector.extract_strided_slice %177 {offsets = [1, 0], sizes = [1, 16], strides = [1, 1]} : vector<3x16xf32> to vector<1x16xf32>
    %231 = vector.extract_strided_slice %177 {offsets = [2, 0], sizes = [1, 16], strides = [1, 1]} : vector<3x16xf32> to vector<1x16xf32>
    %cst_75 = arith.constant dense<0.000000e+00> : vector<16xf32>
    %232 = vector.multi_reduction <add>, %229, %cst_75 [1] : vector<16x16xf32> to vector<16xf32>
    %233 = vector.shape_cast %232 : vector<16xf32> to vector<16x1xf32>
    %cst_76 = arith.constant 1.600000e+01 : f32
    %234 = vector.broadcast %cst_76 : f32 to vector<16x1xf32>
    %235 = arith.divf %233, %234 : vector<16x1xf32>
    %236 = vector.broadcast %235 : vector<16x1xf32> to vector<16x16xf32>
    %237 = arith.subf %229, %236 : vector<16x16xf32>
    %238 = arith.mulf %237, %237 : vector<16x16xf32>
    %cst_77 = arith.constant dense<0.000000e+00> : vector<16xf32>
    %239 = vector.multi_reduction <add>, %238, %cst_77 [1] : vector<16x16xf32> to vector<16xf32>
    %240 = vector.shape_cast %239 : vector<16xf32> to vector<16x1xf32>
    %cst_78 = arith.constant 1.600000e+01 : f32
    %241 = vector.broadcast %cst_78 : f32 to vector<16x1xf32>
    %242 = arith.divf %240, %241 : vector<16x1xf32>
    %243 = vector.broadcast %235 : vector<16x1xf32> to vector<16x16xf32>
    %244 = arith.subf %229, %243 : vector<16x16xf32>
    %cst_79 = arith.constant 9.99999974E-6 : f32
    %245 = vector.broadcast %cst_79 : f32 to vector<16x1xf32>
    %246 = arith.addf %242, %245 : vector<16x1xf32>
    %247 = math.rsqrt %246 : vector<16x1xf32>
    %248 = vector.broadcast %247 : vector<16x1xf32> to vector<16x16xf32>
    %249 = arith.mulf %244, %248 : vector<16x16xf32>
    %250 = vector.broadcast %230 : vector<1x16xf32> to vector<16x16xf32>
    %251 = arith.mulf %249, %250 : vector<16x16xf32>
    %252 = vector.broadcast %231 : vector<1x16xf32> to vector<16x16xf32>
    %253 = arith.addf %251, %252 : vector<16x16xf32>
    %254 = arith.truncf %175 : vector<16x8xf32> to vector<16x8xbf16>
    %c0_80 = arith.constant 0 : index
    %c0_81 = arith.constant 0 : index
    %255 = vector.load %arg15[%c0_80, %c0_81] : memref<8x16xbf16, #tpu.memory_space<vmem>>, vector<8x16xbf16>
    %cst_82 = arith.constant dense<0.000000e+00> : vector<16x16xf32>
    %256 = tpu.matmul %254, %255, %cst_82 {dimension_numbers = #tpu.dot_dimension_numbers<[1], [0], [0], [1], [0, 0, 1, 1], [], []>} : vector<16x8xbf16>, vector<8x16xbf16>, vector<16x16xf32> -> vector<16x16xf32>
    %257 = arith.addf %256, %253 : vector<16x16xf32>
    %cst_83 = arith.constant 0.000000e+00 : f32
    %258 = vector.broadcast %cst_83 : f32 to vector<16x16xf32>
    %259 = arith.maximumf %257, %258 : vector<16x16xf32>
    %260 = arith.truncf %259 : vector<16x16xf32> to vector<16x16xbf16>
    %c0_84 = arith.constant 0 : index
    %c0_85 = arith.constant 0 : index
    %261 = vector.load %arg16[%c0_84, %c0_85] : memref<16x16xbf16, #tpu.memory_space<vmem>>, vector<16x16xbf16>
    %cst_86 = arith.constant dense<0.000000e+00> : vector<16x16xf32>
    %262 = tpu.matmul %260, %261, %cst_86 {dimension_numbers = #tpu.dot_dimension_numbers<[1], [0], [0], [1], [0, 0, 1, 1], [], []>} : vector<16x16xbf16>, vector<16x16xbf16>, vector<16x16xf32> -> vector<16x16xf32>
    %c0_87 = arith.constant 0 : index
    %c0_88 = arith.constant 0 : index
    %263 = vector.load %arg17[%c0_87, %c0_88] : memref<1x16xf32, #tpu.memory_space<vmem>>, vector<1x16xf32>
    %264 = vector.broadcast %263 : vector<1x16xf32> to vector<16x16xf32>
    %265 = arith.addf %262, %264 : vector<16x16xf32>
    %cst_89 = arith.constant 0.000000e+00 : f32
    %266 = vector.broadcast %cst_89 : f32 to vector<16x16xf32>
    %267 = arith.maximumf %265, %266 : vector<16x16xf32>
    %268 = arith.truncf %267 : vector<16x16xf32> to vector<16x16xbf16>
    %c0_90 = arith.constant 0 : index
    %c0_91 = arith.constant 0 : index
    %269 = vector.load %arg18[%c0_90, %c0_91] : memref<16x128xbf16, #tpu.memory_space<vmem>>, vector<16x128xbf16>
    %cst_92 = arith.constant dense<0.000000e+00> : vector<16x128xf32>
    %270 = tpu.matmul %268, %269, %cst_92 {dimension_numbers = #tpu.dot_dimension_numbers<[1], [0], [0], [1], [0, 0, 1, 1], [], []>} : vector<16x16xbf16>, vector<16x128xbf16>, vector<16x128xf32> -> vector<16x128xf32>
    %c0_93 = arith.constant 0 : index
    %c0_94 = arith.constant 0 : index
    %271 = vector.load %arg19[%c0_93, %c0_94] : memref<1x128xf32, #tpu.memory_space<vmem>>, vector<1x128xf32>
    %272 = vector.broadcast %271 : vector<1x128xf32> to vector<16x128xf32>
    %273 = arith.addf %270, %272 : vector<16x128xf32>
    %c0_95 = arith.constant 0 : index
    %c0_96 = arith.constant 0 : index
    %c0_97 = arith.constant 0 : index
    %274 = vector.load %arg20[%c0_95, %c0_96, %c0_97] : memref<1x16x128xf32, #tpu.memory_space<vmem>>, vector<1x16x128xf32>
    %275 = vector.shape_cast %274 : vector<1x16x128xf32> to vector<16x128xf32>
    %276 = vector.shape_cast %273 : vector<16x128xf32> to vector<1x16x128xf32>
    tpu.vector_store %arg20[%c0_95, %c0_96, %c0_97], %276 {strides = array<i32>} : memref<1x16x128xf32, #tpu.memory_space<vmem>>, vector<1x16x128xf32>,
    return
  }
  func.func @transform_0(%arg0: i32) -> (i32, i32, i32) {
    %c0_i32 = arith.constant 0 : i32
    %c0_i32_0 = arith.constant 0 : i32
    %c0_i32_1 = arith.constant 0 : i32
    return %arg0, %c0_i32, %c0_i32_0 : i32, i32, i32
  }
  func.func @transform_1(%arg0: i32) -> (i32, i32) {
    %c0_i32 = arith.constant 0 : i32
    %c0_i32_0 = arith.constant 0 : i32
    %c0_i32_1 = arith.constant 0 : i32
    return %c0_i32, %c0_i32_0 : i32, i32
  }
  func.func @transform_2(%arg0: i32) -> (i32, i32) {
    %c0_i32 = arith.constant 0 : i32
    %c0_i32_0 = arith.constant 0 : i32
    %c0_i32_1 = arith.constant 0 : i32
    return %c0_i32, %c0_i32_0 : i32, i32
  }
  func.func @transform_3(%arg0: i32) -> (i32, i32) {
    %c0_i32 = arith.constant 0 : i32
    %c0_i32_0 = arith.constant 0 : i32
    %c0_i32_1 = arith.constant 0 : i32
    return %c0_i32, %c0_i32_0 : i32, i32
  }
  func.func @transform_4(%arg0: i32) -> (i32, i32) {
    %c0_i32 = arith.constant 0 : i32
    %c0_i32_0 = arith.constant 0 : i32
    %c0_i32_1 = arith.constant 0 : i32
    return %c0_i32, %c0_i32_0 : i32, i32
  }
  func.func @transform_5(%arg0: i32) -> (i32, i32) {
    %c0_i32 = arith.constant 0 : i32
    %c0_i32_0 = arith.constant 0 : i32
    %c0_i32_1 = arith.constant 0 : i32
    return %c0_i32, %c0_i32_0 : i32, i32
  }
  func.func @transform_6(%arg0: i32) -> (i32, i32) {
    %c0_i32 = arith.constant 0 : i32
    %c0_i32_0 = arith.constant 0 : i32
    %c0_i32_1 = arith.constant 0 : i32
    return %c0_i32, %c0_i32_0 : i32, i32
  }
  func.func @transform_7(%arg0: i32) -> (i32, i32) {
    %c0_i32 = arith.constant 0 : i32
    %c0_i32_0 = arith.constant 0 : i32
    %c0_i32_1 = arith.constant 0 : i32
    return %c0_i32, %c0_i32_0 : i32, i32
  }
  func.func @transform_8(%arg0: i32) -> (i32, i32) {
    %c0_i32 = arith.constant 0 : i32
    %c0_i32_0 = arith.constant 0 : i32
    %c0_i32_1 = arith.constant 0 : i32
    return %c0_i32, %c0_i32_0 : i32, i32
  }
  func.func @transform_9(%arg0: i32) -> (i32, i32) {
    %c0_i32 = arith.constant 0 : i32
    %c0_i32_0 = arith.constant 0 : i32
    %c0_i32_1 = arith.constant 0 : i32
    return %c0_i32, %c0_i32_0 : i32, i32
  }
  func.func @transform_10(%arg0: i32) -> (i32, i32) {
    %c0_i32 = arith.constant 0 : i32
    %c0_i32_0 = arith.constant 0 : i32
    %c0_i32_1 = arith.constant 0 : i32
    return %c0_i32, %c0_i32_0 : i32, i32
  }
  func.func @transform_11(%arg0: i32) -> (i32, i32) {
    %c0_i32 = arith.constant 0 : i32
    %c0_i32_0 = arith.constant 0 : i32
    %c0_i32_1 = arith.constant 0 : i32
    return %c0_i32, %c0_i32_0 : i32, i32
  }
  func.func @transform_12(%arg0: i32) -> (i32, i32) {
    %c0_i32 = arith.constant 0 : i32
    %c0_i32_0 = arith.constant 0 : i32
    %c0_i32_1 = arith.constant 0 : i32
    return %c0_i32, %c0_i32_0 : i32, i32
  }
  func.func @transform_13(%arg0: i32) -> (i32, i32) {
    %c0_i32 = arith.constant 0 : i32
    %c0_i32_0 = arith.constant 0 : i32
    %c0_i32_1 = arith.constant 0 : i32
    return %c0_i32, %c0_i32_0 : i32, i32
  }
  func.func @transform_14(%arg0: i32) -> (i32, i32) {
    %c0_i32 = arith.constant 0 : i32
    %c0_i32_0 = arith.constant 0 : i32
    %c0_i32_1 = arith.constant 0 : i32
    return %c0_i32, %c0_i32_0 : i32, i32
  }
  func.func @transform_15(%arg0: i32) -> (i32, i32) {
    %c0_i32 = arith.constant 0 : i32
    %c0_i32_0 = arith.constant 0 : i32
    %c0_i32_1 = arith.constant 0 : i32
    return %c0_i32, %c0_i32_0 : i32, i32
  }
  func.func @transform_16(%arg0: i32) -> (i32, i32) {
    %c0_i32 = arith.constant 0 : i32
    %c0_i32_0 = arith.constant 0 : i32
    %c0_i32_1 = arith.constant 0 : i32
    return %c0_i32, %c0_i32_0 : i32, i32
  }
  func.func @transform_17(%arg0: i32) -> (i32, i32) {
    %c0_i32 = arith.constant 0 : i32
    %c0_i32_0 = arith.constant 0 : i32
    %c0_i32_1 = arith.constant 0 : i32
    return %c0_i32, %c0_i32_0 : i32, i32
  }
  func.func @transform_18(%arg0: i32) -> (i32, i32) {
    %c0_i32 = arith.constant 0 : i32
    %c0_i32_0 = arith.constant 0 : i32
    %c0_i32_1 = arith.constant 0 : i32
    return %c0_i32, %c0_i32_0 : i32, i32
  }
  func.func @transform_19(%arg0: i32) -> (i32, i32, i32) {
    %c0_i32 = arith.constant 0 : i32
    %c0_i32_0 = arith.constant 0 : i32
    %c0_i32_1 = arith.constant 0 : i32
    return %arg0, %c0_i32, %c0_i32_0 : i32, i32, i32
  }
}

</mosaic_0001>

<llo_original>
// kernel: tpu_custom_call.1
$region0: #{tpu_custom_call.1}
  #allocation0 [shape = 'u32[]', space=smem, size = 0x4, offset = 0x4, fixed_abs, tag = 'smem constant byte address 0x4 - core index']
  #allocation1 [shape = 'u32[144,128]{1,0:T(1,128)}', space=vmem, size = 0x12000, scoped, tag = 'internal scratch']
  %s0 = inlined_call_operand.vmem [shape: f32[2,16,4], index: 0, kind: input, shape index: {}]
  %s1 = inlined_call_operand.vmem [shape: bf16[12,8], index: 1, kind: input, shape index: {}]
  %s2 = inlined_call_operand.vmem [shape: f32[3,8], index: 2, kind: input, shape index: {}]
  %s3 = inlined_call_operand.vmem [shape: bf16[24,8], index: 3, kind: input, shape index: {}]
  %s4 = inlined_call_operand.vmem [shape: f32[3,8], index: 4, kind: input, shape index: {}]
  %s5 = inlined_call_operand.vmem [shape: bf16[4,8], index: 5, kind: input, shape index: {}]
  %s6 = inlined_call_operand.vmem [shape: bf16[24,8], index: 6, kind: input, shape index: {}]
  %s7 = inlined_call_operand.vmem [shape: f32[3,8], index: 7, kind: input, shape index: {}]
  %s8 = inlined_call_operand.vmem [shape: bf16[24,8], index: 8, kind: input, shape index: {}]
  %s9 = inlined_call_operand.vmem [shape: f32[3,8], index: 9, kind: input, shape index: {}]
  %s10 = inlined_call_operand.vmem [shape: bf16[24,16], index: 10, kind: input, shape index: {}]
  %s11 = inlined_call_operand.vmem [shape: f32[3,16], index: 11, kind: input, shape index: {}]
  %s12 = inlined_call_operand.vmem [shape: bf16[48,16], index: 12, kind: input, shape index: {}]
  %s13 = inlined_call_operand.vmem [shape: f32[3,16], index: 13, kind: input, shape index: {}]
  %s14 = inlined_call_operand.vmem [shape: bf16[8,16], index: 14, kind: input, shape index: {}]
  %s15 = inlined_call_operand.vmem [shape: bf16[16,16], index: 15, kind: input, shape index: {}]
  %s16 = inlined_call_operand.vmem [shape: f32[1,16], index: 16, kind: input, shape index: {}]
  %s17 = inlined_call_operand.vmem [shape: bf16[16,128], index: 17, kind: input, shape index: {}]
  %s18 = inlined_call_operand.vmem [shape: f32[1,128], index: 18, kind: input, shape index: {}]
  %s19 = inlined_call_operand.hbm [shape: f32[2,16,128], index: 19, kind: output, shape index: {}]
  %s20 = sld [smem:[#allocation0]]
  $region109: #{tpu_custom_call.1} parent=0
    _
  %s22 = ssub.s32 1, %s20
  %s23 = scalar_select 0, %s22, %s20
  $region1: #{tpu_custom_call.1} parent=0
    #allocation2 [shape = 'u8[16384]{0}', space=vmem, size = 0x4000, scoped, tag = 'output window, operand 0']
    #allocation3 [shape = 's32[2]{0}', space=sflag, size = 0x8, scoped, tag = 'scoped memory for tpu_custom_call.1']
    %24 = vsyncpa [#allocation3], 0
    %s25 = scalar_lea.sflag [#allocation3], 1
    %26 = vsyncpa %s25, 0
    loop: start=0, step=1, limit=4
    $region2: #{tpu_custom_call.1} parent=1 // loop_pre_header
      _
    $region3: #{tpu_custom_call.1} parent=1 // loop_header
      %s28 = sphi 0, %s32
      %p29 = scmp.ge.s32.totalorder %s28, 4
      %s38 = sphi 0, %s40
      %s41 = sphi 0, %s38
      %s42 = sphi 0, %s41
      %s58 = sphi 0, %s42
      %s62 = sphi 0, %s62
      %s64 = sphi 0, %s62
      %s65 = sphi 0, %s64
      %s79 = sphi 0, %s65
      %s83 = sphi 0, %s83
      %s85 = sphi 0, %s83
      %s86 = sphi 0, %s85
      %s100 = sphi 0, %s86
      %s104 = sphi 0, %s104
      %s106 = sphi 0, %s104
      %s107 = sphi 0, %s106
      %s121 = sphi 0, %s107
      %s125 = sphi 0, %s125
      %s127 = sphi 0, %s125
      %s128 = sphi 0, %s127
      %s142 = sphi 0, %s128
      %s146 = sphi 0, %s146
      %s148 = sphi 0, %s146
      %s149 = sphi 0, %s148
      %s163 = sphi 0, %s149
      %s167 = sphi 0, %s167
      %s169 = sphi 0, %s167
      %s170 = sphi 0, %s169
      %s184 = sphi 0, %s170
      %s188 = sphi 0, %s188
      %s190 = sphi 0, %s188
      %s191 = sphi 0, %s190
      %s205 = sphi 0, %s191
      %s209 = sphi 0, %s209
      %s211 = sphi 0, %s209
      %s212 = sphi 0, %s211
      %s226 = sphi 0, %s212
      %s230 = sphi 0, %s230
      %s232 = sphi 0, %s230
      %s233 = sphi 0, %s232
      %s247 = sphi 0, %s233
      %s251 = sphi 0, %s251
      %s253 = sphi 0, %s251
      %s254 = sphi 0, %s253
      %s268 = sphi 0, %s254
      %s272 = sphi 0, %s272
      %s274 = sphi 0, %s272
      %s275 = sphi 0, %s274
      %s289 = sphi 0, %s275
      %s293 = sphi 0, %s293
      %s295 = sphi 0, %s293
      %s296 = sphi 0, %s295
      %s310 = sphi 0, %s296
      %s314 = sphi 0, %s314
      %s316 = sphi 0, %s314
      %s317 = sphi 0, %s316
      %s331 = sphi 0, %s317
      %s335 = sphi 0, %s335
      %s337 = sphi 0, %s335
      %s338 = sphi 0, %s337
      %s352 = sphi 0, %s338
      %s356 = sphi 0, %s356
      %s358 = sphi 0, %s356
      %s359 = sphi 0, %s358
      %s373 = sphi 0, %s359
      %s377 = sphi 0, %s377
      %s379 = sphi 0, %s377
      %s380 = sphi 0, %s379
      %s394 = sphi 0, %s380
      %s398 = sphi 0, %s398
      %s400 = sphi 0, %s398
      %s401 = sphi 0, %s400
      %s415 = sphi 0, %s401
      %s419 = sphi 0, %s419
      %s421 = sphi 0, %s419
      %s422 = sphi 0, %s421
      %s436 = sphi 0, %s422
      %s442 = sphi 0, %s444
      %s445 = sphi 0, %s442
      %s446 = sphi 0, %s445
      %s462 = sphi 0, %s446
    $region4: #{tpu_custom_call.1} parent=1 // loop_header_branch
      %31 = sbr.rel (%p29) target = $region8
    $region5: #{tpu_custom_call.1} parent=1 // loop_body
      %s33 = ssub.s32 %s28, 1
      %s34 = ssub.s32 %s28, 2
      %s35 = sadd.s32 %s28, 1
      %s36 = ssub.s32 %s28, %s35
      %p37 = scmp.eq.s32.totalorder %s36, 0
      %s39 = sadd.s32 %s38, 1
      %s40 = scalar_select %p37, %s38, %s39
      %p43 = pneg %p37
      %p44 = scmp.eq.s32.totalorder %s28, 1
      %p45 = por %p43, %p44
      %p46 = scmp.ne.s32.totalorder %s38, %s41
      %p47 = scmp.eq.s32.totalorder %s28, 0
      %p48 = por %p46, %p47
      %p49 = scmp.ne.s32.totalorder %s38, %s41
      %p50 = scmp.eq.s32.totalorder %s33, 1
      %p51 = por %p49, %p50
      %p52 = scmp.ne.s32.totalorder %s41, %s42
      %p53 = scmp.eq.s32.totalorder %s33, 0
      %p54 = por %p52, %p53
      %p55 = scmp.ne.s32.totalorder %s41, %s42
      %p56 = scmp.eq.s32.totalorder %s34, 1
      %p57 = por %p55, %p56
      %p59 = scmp.ne.s32.totalorder %s42, %s58
      %p60 = scmp.eq.s32.totalorder %s34, 0
      %p61 = por %p59, %p60
      %s63 = sadd.s32 %s62, 1
      %p66 = scmp.eq.s32.totalorder %s28, 1
      %p67 = scmp.ne.s32.totalorder %s62, %s64
      %p68 = scmp.eq.s32.totalorder %s28, 0
      %p69 = por %p67, %p68
      %p70 = scmp.ne.s32.totalorder %s62, %s64
      %p71 = scmp.eq.s32.totalorder %s33, 1
      %p72 = por %p70, %p71
      %p73 = scmp.ne.s32.totalorder %s64, %s65
      %p74 = scmp.eq.s32.totalorder %s33, 0
      %p75 = por %p73, %p74
      %p76 = scmp.ne.s32.totalorder %s64, %s65
      %p77 = scmp.eq.s32.totalorder %s34, 1
      %p78 = por %p76, %p77
      %p80 = scmp.ne.s32.totalorder %s65, %s79
      %p81 = scmp.eq.s32.totalorder %s34, 0
      %p82 = por %p80, %p81
      %s84 = sadd.s32 %s83, 1
      %p87 = scmp.eq.s32.totalorder %s28, 1
      %p88 = scmp.ne.s32.totalorder %s83, %s85
      %p89 = scmp.eq.s32.totalorder %s28, 0
      %p90 = por %p88, %p89
      %p91 = scmp.ne.s32.totalorder %s83, %s85
      %p92 = scmp.eq.s32.totalorder %s33, 1
      %p93 = por %p91, %p92
      %p94 = scmp.ne.s32.totalorder %s85, %s86
      %p95 = scmp.eq.s32.totalorder %s33, 0
      %p96 = por %p94, %p95
      %p97 = scmp.ne.s32.totalorder %s85, %s86
      %p98 = scmp.eq.s32.totalorder %s34, 1
      %p99 = por %p97, %p98
      %p101 = scmp.ne.s32.totalorder %s86, %s100
      %p102 = scmp.eq.s32.totalorder %s34, 0
      %p103 = por %p101, %p102
      %s105 = sadd.s32 %s104, 1
      %p108 = scmp.eq.s32.totalorder %s28, 1
      %p109 = scmp.ne.s32.totalorder %s104, %s106
      %p110 = scmp.eq.s32.totalorder %s28, 0
      %p111 = por %p109, %p110
      %p112 = scmp.ne.s32.totalorder %s104, %s106
      %p113 = scmp.eq.s32.totalorder %s33, 1
      %p114 = por %p112, %p113
      %p115 = scmp.ne.s32.totalorder %s106, %s107
      %p116 = scmp.eq.s32.totalorder %s33, 0
      %p117 = por %p115, %p116
      %p118 = scmp.ne.s32.totalorder %s106, %s107
      %p119 = scmp.eq.s32.totalorder %s34, 1
      %p120 = por %p118, %p119
      %p122 = scmp.ne.s32.totalorder %s107, %s121
      %p123 = scmp.eq.s32.totalorder %s34, 0
      %p124 = por %p122, %p123
      %s126 = sadd.s32 %s125, 1
      %p129 = scmp.eq.s32.totalorder %s28, 1
      %p130 = scmp.ne.s32.totalorder %s125, %s127
      %p131 = scmp.eq.s32.totalorder %s28, 0
      %p132 = por %p130, %p131
      %p133 = scmp.ne.s32.totalorder %s125, %s127
      %p134 = scmp.eq.s32.totalorder %s33, 1
      %p135 = por %p133, %p134
      %p136 = scmp.ne.s32.totalorder %s127, %s128
      %p137 = scmp.eq.s32.totalorder %s33, 0
      %p138 = por %p136, %p137
      %p139 = scmp.ne.s32.totalorder %s127, %s128
      %p140 = scmp.eq.s32.totalorder %s34, 1
      %p141 = por %p139, %p140
      %p143 = scmp.ne.s32.totalorder %s128, %s142
      %p144 = scmp.eq.s32.totalorder %s34, 0
      %p145 = por %p143, %p144
      %s147 = sadd.s32 %s146, 1
      %p150 = scmp.eq.s32.totalorder %s28, 1
      %p151 = scmp.ne.s32.totalorder %s146, %s148
      %p152 = scmp.eq.s32.totalorder %s28, 0
      %p153 = por %p151, %p152
      %p154 = scmp.ne.s32.totalorder %s146, %s148
      %p155 = scmp.eq.s32.totalorder %s33, 1
      %p156 = por %p154, %p155
      %p157 = scmp.ne.s32.totalorder %s148, %s149
      %p158 = scmp.eq.s32.totalorder %s33, 0
      %p159 = por %p157, %p158
      %p160 = scmp.ne.s32.totalorder %s148, %s149
      %p161 = scmp.eq.s32.totalorder %s34, 1
      %p162 = por %p160, %p161
      %p164 = scmp.ne.s32.totalorder %s149, %s163
      %p165 = scmp.eq.s32.totalorder %s34, 0
      %p166 = por %p164, %p165
      %s168 = sadd.s32 %s167, 1
      %p171 = scmp.eq.s32.totalorder %s28, 1
      %p172 = scmp.ne.s32.totalorder %s167, %s169
      %p173 = scmp.eq.s32.totalorder %s28, 0
      %p174 = por %p172, %p173
      %p175 = scmp.ne.s32.totalorder %s167, %s169
      %p176 = scmp.eq.s32.totalorder %s33, 1
      %p177 = por %p175, %p176
      %p178 = scmp.ne.s32.totalorder %s169, %s170
      %p179 = scmp.eq.s32.totalorder %s33, 0
      %p180 = por %p178, %p179
      %p181 = scmp.ne.s32.totalorder %s169, %s170
      %p182 = scmp.eq.s32.totalorder %s34, 1
      %p183 = por %p181, %p182
      %p185 = scmp.ne.s32.totalorder %s170, %s184
      %p186 = scmp.eq.s32.totalorder %s34, 0
      %p187 = por %p185, %p186
      %s189 = sadd.s32 %s188, 1
      %p192 = scmp.eq.s32.totalorder %s28, 1
      %p193 = scmp.ne.s32.totalorder %s188, %s190
      %p194 = scmp.eq.s32.totalorder %s28, 0
      %p195 = por %p193, %p194
      %p196 = scmp.ne.s32.totalorder %s188, %s190
      %p197 = scmp.eq.s32.totalorder %s33, 1
      %p198 = por %p196, %p197
      %p199 = scmp.ne.s32.totalorder %s190, %s191
      %p200 = scmp.eq.s32.totalorder %s33, 0
      %p201 = por %p199, %p200
      %p202 = scmp.ne.s32.totalorder %s190, %s191
      %p203 = scmp.eq.s32.totalorder %s34, 1
      %p204 = por %p202, %p203
      %p206 = scmp.ne.s32.totalorder %s191, %s205
      %p207 = scmp.eq.s32.totalorder %s34, 0
      %p208 = por %p206, %p207
      %s210 = sadd.s32 %s209, 1
      %p213 = scmp.eq.s32.totalorder %s28, 1
      %p214 = scmp.ne.s32.totalorder %s209, %s211
      %p215 = scmp.eq.s32.totalorder %s28, 0
      %p216 = por %p214, %p215
      %p217 = scmp.ne.s32.totalorder %s209, %s211
      %p218 = scmp.eq.s32.totalorder %s33, 1
      %p219 = por %p217, %p218
      %p220 = scmp.ne.s32.totalorder %s211, %s212
      %p221 = scmp.eq.s32.totalorder %s33, 0
      %p222 = por %p220, %p221
      %p223 = scmp.ne.s32.totalorder %s211, %s212
      %p224 = scmp.eq.s32.totalorder %s34, 1
      %p225 = por %p223, %p224
      %p227 = scmp.ne.s32.totalorder %s212, %s226
      %p228 = scmp.eq.s32.totalorder %s34, 0
      %p229 = por %p227, %p228
      %s231 = sadd.s32 %s230, 1
      %p234 = scmp.eq.s32.totalorder %s28, 1
      %p235 = scmp.ne.s32.totalorder %s230, %s232
      %p236 = scmp.eq.s32.totalorder %s28, 0
      %p237 = por %p235, %p236
      %p238 = scmp.ne.s32.totalorder %s230, %s232
      %p239 = scmp.eq.s32.totalorder %s33, 1
      %p240 = por %p238, %p239
      %p241 = scmp.ne.s32.totalorder %s232, %s233
      %p242 = scmp.eq.s32.totalorder %s33, 0
      %p243 = por %p241, %p242
      %p244 = scmp.ne.s32.totalorder %s232, %s233
      %p245 = scmp.eq.s32.totalorder %s34, 1
      %p246 = por %p244, %p245
      %p248 = scmp.ne.s32.totalorder %s233, %s247
      %p249 = scmp.eq.s32.totalorder %s34, 0
      %p250 = por %p248, %p249
      %s252 = sadd.s32 %s251, 1
      %p255 = scmp.eq.s32.totalorder %s28, 1
      %p256 = scmp.ne.s32.totalorder %s251, %s253
      %p257 = scmp.eq.s32.totalorder %s28, 0
      %p258 = por %p256, %p257
      %p259 = scmp.ne.s32.totalorder %s251, %s253
      %p260 = scmp.eq.s32.totalorder %s33, 1
      %p261 = por %p259, %p260
      %p262 = scmp.ne.s32.totalorder %s253, %s254
      %p263 = scmp.eq.s32.totalorder %s33, 0
      %p264 = por %p262, %p263
      %p265 = scmp.ne.s32.totalorder %s253, %s254
      %p266 = scmp.eq.s32.totalorder %s34, 1
      %p267 = por %p265, %p266
      %p269 = scmp.ne.s32.totalorder %s254, %s268
      %p270 = scmp.eq.s32.totalorder %s34, 0
      %p271 = por %p269, %p270
      %s273 = sadd.s32 %s272, 1
      %p276 = scmp.eq.s32.totalorder %s28, 1
      %p277 = scmp.ne.s32.totalorder %s272, %s274
      %p278 = scmp.eq.s32.totalorder %s28, 0
      %p279 = por %p277, %p278
      %p280 = scmp.ne.s32.totalorder %s272, %s274
      %p281 = scmp.eq.s32.totalorder %s33, 1
      %p282 = por %p280, %p281
      %p283 = scmp.ne.s32.totalorder %s274, %s275
      %p284 = scmp.eq.s32.totalorder %s33, 0
      %p285 = por %p283, %p284
      %p286 = scmp.ne.s32.totalorder %s274, %s275
      %p287 = scmp.eq.s32.totalorder %s34, 1
      %p288 = por %p286, %p287
      %p290 = scmp.ne.s32.totalorder %s275, %s289
      %p291 = scmp.eq.s32.totalorder %s34, 0
      %p292 = por %p290, %p291
      %s294 = sadd.s32 %s293, 1
      %p297 = scmp.eq.s32.totalorder %s28, 1
      %p298 = scmp.ne.s32.totalorder %s293, %s295
      %p299 = scmp.eq.s32.totalorder %s28, 0
      %p300 = por %p298, %p299
      %p301 = scmp.ne.s32.totalorder %s293, %s295
      %p302 = scmp.eq.s32.totalorder %s33, 1
      %p303 = por %p301, %p302
      %p304 = scmp.ne.s32.totalorder %s295, %s296
      %p305 = scmp.eq.s32.totalorder %s33, 0
      %p306 = por %p304, %p305
      %p307 = scmp.ne.s32.totalorder %s295, %s296
      %p308 = scmp.eq.s32.totalorder %s34, 1
      %p309 = por %p307, %p308
      %p311 = scmp.ne.s32.totalorder %s296, %s310
      %p312 = scmp.eq.s32.totalorder %s34, 0
      %p313 = por %p311, %p312
      %s315 = sadd.s32 %s314, 1
      %p318 = scmp.eq.s32.totalorder %s28, 1
      %p319 = scmp.ne.s32.totalorder %s314, %s316
      %p320 = scmp.eq.s32.totalorder %s28, 0
      %p321 = por %p319, %p320
      %p322 = scmp.ne.s32.totalorder %s314, %s316
      %p323 = scmp.eq.s32.totalorder %s33, 1
      %p324 = por %p322, %p323
      %p325 = scmp.ne.s32.totalorder %s316, %s317
      %p326 = scmp.eq.s32.totalorder %s33, 0
      %p327 = por %p325, %p326
      %p328 = scmp.ne.s32.totalorder %s316, %s317
      %p329 = scmp.eq.s32.totalorder %s34, 1
      %p330 = por %p328, %p329
      %p332 = scmp.ne.s32.totalorder %s317, %s331
      %p333 = scmp.eq.s32.totalorder %s34, 0
      %p334 = por %p332, %p333
      %s336 = sadd.s32 %s335, 1
      %p339 = scmp.eq.s32.totalorder %s28, 1
      %p340 = scmp.ne.s32.totalorder %s335, %s337
      %p341 = scmp.eq.s32.totalorder %s28, 0
      %p342 = por %p340, %p341
      %p343 = scmp.ne.s32.totalorder %s335, %s337
      %p344 = scmp.eq.s32.totalorder %s33, 1
      %p345 = por %p343, %p344
      %p346 = scmp.ne.s32.totalorder %s337, %s338
      %p347 = scmp.eq.s32.totalorder %s33, 0
      %p348 = por %p346, %p347
      %p349 = scmp.ne.s32.totalorder %s337, %s338
      %p350 = scmp.eq.s32.totalorder %s34, 1
      %p351 = por %p349, %p350
      %p353 = scmp.ne.s32.totalorder %s338, %s352
      %p354 = scmp.eq.s32.totalorder %s34, 0
      %p355 = por %p353, %p354
      %s357 = sadd.s32 %s356, 1
      %p360 = scmp.eq.s32.totalorder %s28, 1
      %p361 = scmp.ne.s32.totalorder %s356, %s358
      %p362 = scmp.eq.s32.totalorder %s28, 0
      %p363 = por %p361, %p362
      %p364 = scmp.ne.s32.totalorder %s356, %s358
      %p365 = scmp.eq.s32.totalorder %s33, 1
      %p366 = por %p364, %p365
      %p367 = scmp.ne.s32.totalorder %s358, %s359
      %p368 = scmp.eq.s32.totalorder %s33, 0
      %p369 = por %p367, %p368
      %p370 = scmp.ne.s32.totalorder %s358, %s359
      %p371 = scmp.eq.s32.totalorder %s34, 1
      %p372 = por %p370, %p371
      %p374 = scmp.ne.s32.totalorder %s359, %s373
      %p375 = scmp.eq.s32.totalorder %s34, 0
      %p376 = por %p374, %p375
      %s378 = sadd.s32 %s377, 1
      %p381 = scmp.eq.s32.totalorder %s28, 1
      %p382 = scmp.ne.s32.totalorder %s377, %s379
      %p383 = scmp.eq.s32.totalorder %s28, 0
      %p384 = por %p382, %p383
      %p385 = scmp.ne.s32.totalorder %s377, %s379
      %p386 = scmp.eq.s32.totalorder %s33, 1
      %p387 = por %p385, %p386
      %p388 = scmp.ne.s32.totalorder %s379, %s380
      %p389 = scmp.eq.s32.totalorder %s33, 0
      %p390 = por %p388, %p389
      %p391 = scmp.ne.s32.totalorder %s379, %s380
      %p392 = scmp.eq.s32.totalorder %s34, 1
      %p393 = por %p391, %p392
      %p395 = scmp.ne.s32.totalorder %s380, %s394
      %p396 = scmp.eq.s32.totalorder %s34, 0
      %p397 = por %p395, %p396
      %s399 = sadd.s32 %s398, 1
      %p402 = scmp.eq.s32.totalorder %s28, 1
      %p403 = scmp.ne.s32.totalorder %s398, %s400
      %p404 = scmp.eq.s32.totalorder %s28, 0
      %p405 = por %p403, %p404
      %p406 = scmp.ne.s32.totalorder %s398, %s400
      %p407 = scmp.eq.s32.totalorder %s33, 1
      %p408 = por %p406, %p407
      %p409 = scmp.ne.s32.totalorder %s400, %s401
      %p410 = scmp.eq.s32.totalorder %s33, 0
      %p411 = por %p409, %p410
      %p412 = scmp.ne.s32.totalorder %s400, %s401
      %p413 = scmp.eq.s32.totalorder %s34, 1
      %p414 = por %p412, %p413
      %p416 = scmp.ne.s32.totalorder %s401, %s415
      %p417 = scmp.eq.s32.totalorder %s34, 0
      %p418 = por %p416, %p417
      %s420 = sadd.s32 %s419, 1
      %p423 = scmp.eq.s32.totalorder %s28, 1
      %p424 = scmp.ne.s32.totalorder %s419, %s421
      %p425 = scmp.eq.s32.totalorder %s28, 0
      %p426 = por %p424, %p425
      %p427 = scmp.ne.s32.totalorder %s419, %s421
      %p428 = scmp.eq.s32.totalorder %s33, 1
      %p429 = por %p427, %p428
      %p430 = scmp.ne.s32.totalorder %s421, %s422
      %p431 = scmp.eq.s32.totalorder %s33, 0
      %p432 = por %p430, %p431
      %p433 = scmp.ne.s32.totalorder %s421, %s422
      %p434 = scmp.eq.s32.totalorder %s34, 1
      %p435 = por %p433, %p434
      %p437 = scmp.ne.s32.totalorder %s422, %s436
      %p438 = scmp.eq.s32.totalorder %s34, 0
      %p439 = por %p437, %p438
      %s440 = ssub.s32 %s28, %s35
      %p441 = scmp.eq.s32.totalorder %s440, 0
      %s443 = sadd.s32 %s442, 1
      %s444 = scalar_select %p441, %s442, %s443
      %p447 = pneg %p441
      %p448 = scmp.eq.s32.totalorder %s28, 1
      %p449 = por %p447, %p448
      %p450 = scmp.ne.s32.totalorder %s442, %s445
      %p451 = scmp.eq.s32.totalorder %s28, 0
      %p452 = por %p450, %p451
      %p453 = scmp.ne.s32.totalorder %s442, %s445
      %p454 = scmp.eq.s32.totalorder %s33, 1
      %p455 = por %p453, %p454
      %p456 = scmp.ne.s32.totalorder %s445, %s446
      %p457 = scmp.eq.s32.totalorder %s33, 0
      %p458 = por %p456, %p457
      %p459 = scmp.ne.s32.totalorder %s445, %s446
      %p460 = scmp.eq.s32.totalorder %s34, 1
      %p461 = por %p459, %p460
      %p463 = scmp.ne.s32.totalorder %s446, %s462
      %p464 = scmp.eq.s32.totalorder %s34, 0
      %p465 = por %p463, %p464
      %p466 = scmp.le.s32.totalorder 1, %s28
      %p467 = scmp.lt.s32.totalorder %s28, 3
      %p468 = pnand %p466, %p467
      %p469 = pneg %p468
      // Predicated region
      $region9: #{tpu_custom_call.1} parent=5 // pred_check
        _
      $region10: #{tpu_custom_call.1} parent=5 // pred_check_branch
        %471 = sbr.rel (%p468) target = $region12
      $region11: #{tpu_custom_call.1} parent=5 // pred_region
        %s472 = ssub.s32 %s28, 1
        // Predicated region
        $region13: #{tpu_custom_call.1} parent=11 // pred_check
          %p473 = pneg %p75
        $region14: #{tpu_custom_call.1} parent=11 // pred_check_branch
          %475 = sbr.rel (%p473) target = $region16
        $region15: #{tpu_custom_call.1} parent=11 // pred_region
          _
        $region16: #{tpu_custom_call.1} parent=11 // pred_fallthru
          _
        // Predicated region
        $region17: #{tpu_custom_call.1} parent=11 // pred_check
          %p476 = pneg %p96
        $region18: #{tpu_custom_call.1} parent=11 // pred_check_branch
          %478 = sbr.rel (%p476) target = $region20
        $region19: #{tpu_custom_call.1} parent=11 // pred_region
          _
        $region20: #{tpu_custom_call.1} parent=11 // pred_fallthru
          _
        // Predicated region
        $region21: #{tpu_custom_call.1} parent=11 // pred_check
          %p479 = pneg %p117
        $region22: #{tpu_custom_call.1} parent=11 // pred_check_branch
          %481 = sbr.rel (%p479) target = $region24
        $region23: #{tpu_custom_call.1} parent=11 // pred_region
          _
        $region24: #{tpu_custom_call.1} parent=11 // pred_fallthru
          _
        // Predicated region
        $region25: #{tpu_custom_call.1} parent=11 // pred_check
          %p482 = pneg %p138
        $region26: #{tpu_custom_call.1} parent=11 // pred_check_branch
          %484 = sbr.rel (%p482) target = $region28
        $region27: #{tpu_custom_call.1} parent=11 // pred_region
          _
        $region28: #{tpu_custom_call.1} parent=11 // pred_fallthru
          _
        // Predicated region
        $region29: #{tpu_custom_call.1} parent=11 // pred_check
          %p485 = pneg %p159
        $region30: #{tpu_custom_call.1} parent=11 // pred_check_branch
          %487 = sbr.rel (%p485) target = $region32
        $region31: #{tpu_custom_call.1} parent=11 // pred_region
          _
        $region32: #{tpu_custom_call.1} parent=11 // pred_fallthru
          _
        // Predicated region
        $region33: #{tpu_custom_call.1} parent=11 // pred_check
          %p488 = pneg %p180
        $region34: #{tpu_custom_call.1} parent=11 // pred_check_branch
          %490 = sbr.rel (%p488) target = $region36
        $region35: #{tpu_custom_call.1} parent=11 // pred_region
          _
        $region36: #{tpu_custom_call.1} parent=11 // pred_fallthru
          _
        // Predicated region
        $region37: #{tpu_custom_call.1} parent=11 // pred_check
          %p491 = pneg %p201
        $region38: #{tpu_custom_call.1} parent=11 // pred_check_branch
          %493 = sbr.rel (%p491) target = $region40
        $region39: #{tpu_custom_call.1} parent=11 // pred_region
          _
        $region40: #{tpu_custom_call.1} parent=11 // pred_fallthru
          _
        // Predicated region
        $region41: #{tpu_custom_call.1} parent=11 // pred_check
          %p494 = pneg %p222
        $region42: #{tpu_custom_call.1} parent=11 // pred_check_branch
          %496 = sbr.rel (%p494) target = $region44
        $region43: #{tpu_custom_call.1} parent=11 // pred_region
          _
        $region44: #{tpu_custom_call.1} parent=11 // pred_fallthru
          _
        // Predicated region
        $region45: #{tpu_custom_call.1} parent=11 // pred_check
          %p497 = pneg %p243
        $region46: #{tpu_custom_call.1} parent=11 // pred_check_branch
          %499 = sbr.rel (%p497) target = $region48
        $region47: #{tpu_custom_call.1} parent=11 // pred_region
          _
        $region48: #{tpu_custom_call.1} parent=11 // pred_fallthru
          _
        // Predicated region
        $region49: #{tpu_custom_call.1} parent=11 // pred_check
          %p500 = pneg %p264
        $region50: #{tpu_custom_call.1} parent=11 // pred_check_branch
          %502 = sbr.rel (%p500) target = $region52
        $region51: #{tpu_custom_call.1} parent=11 // pred_region
          _
        $region52: #{tpu_custom_call.1} parent=11 // pred_fallthru
          _
        // Predicated region
        $region53: #{tpu_custom_call.1} parent=11 // pred_check
          %p503 = pneg %p285
        $region54: #{tpu_custom_call.1} parent=11 // pred_check_branch
          %505 = sbr.rel (%p503) target = $region56
        $region55: #{tpu_custom_call.1} parent=11 // pred_region
          _
        $region56: #{tpu_custom_call.1} parent=11 // pred_fallthru
          _
        // Predicated region
        $region57: #{tpu_custom_call.1} parent=11 // pred_check
          %p506 = pneg %p306
        $region58: #{tpu_custom_call.1} parent=11 // pred_check_branch
          %508 = sbr.rel (%p506) target = $region60
        $region59: #{tpu_custom_call.1} parent=11 // pred_region
          _
        $region60: #{tpu_custom_call.1} parent=11 // pred_fallthru
          _
        // Predicated region
        $region61: #{tpu_custom_call.1} parent=11 // pred_check
          %p509 = pneg %p327
        $region62: #{tpu_custom_call.1} parent=11 // pred_check_branch
          %511 = sbr.rel (%p509) target = $region64
        $region63: #{tpu_custom_call.1} parent=11 // pred_region
          _
        $region64: #{tpu_custom_call.1} parent=11 // pred_fallthru
          _
        // Predicated region
        $region65: #{tpu_custom_call.1} parent=11 // pred_check
          %p512 = pneg %p348
        $region66: #{tpu_custom_call.1} parent=11 // pred_check_branch
          %514 = sbr.rel (%p512) target = $region68
        $region67: #{tpu_custom_call.1} parent=11 // pred_region
          _
        $region68: #{tpu_custom_call.1} parent=11 // pred_fallthru
          _
        // Predicated region
        $region69: #{tpu_custom_call.1} parent=11 // pred_check
          %p515 = pneg %p369
        $region70: #{tpu_custom_call.1} parent=11 // pred_check_branch
          %517 = sbr.rel (%p515) target = $region72
        $region71: #{tpu_custom_call.1} parent=11 // pred_region
          _
        $region72: #{tpu_custom_call.1} parent=11 // pred_fallthru
          _
        // Predicated region
        $region73: #{tpu_custom_call.1} parent=11 // pred_check
          %p518 = pneg %p390
        $region74: #{tpu_custom_call.1} parent=11 // pred_check_branch
          %520 = sbr.rel (%p518) target = $region76
        $region75: #{tpu_custom_call.1} parent=11 // pred_region
          _
        $region76: #{tpu_custom_call.1} parent=11 // pred_fallthru
          _
        // Predicated region
        $region77: #{tpu_custom_call.1} parent=11 // pred_check
          %p521 = pneg %p411
        $region78: #{tpu_custom_call.1} parent=11 // pred_check_branch
          %523 = sbr.rel (%p521) target = $region80
        $region79: #{tpu_custom_call.1} parent=11 // pred_region
          _
        $region80: #{tpu_custom_call.1} parent=11 // pred_fallthru
          _
        // Predicated region
        $region81: #{tpu_custom_call.1} parent=11 // pred_check
          %p524 = pneg %p432
        $region82: #{tpu_custom_call.1} parent=11 // pred_check_branch
          %526 = sbr.rel (%p524) target = $region84
        $region83: #{tpu_custom_call.1} parent=11 // pred_region
          _
        $region84: #{tpu_custom_call.1} parent=11 // pred_fallthru
          _
      $region12: #{tpu_custom_call.1} parent=5 // pred_fallthru
        _
      %p527 = scmp.lt.s32.totalorder %s28, 2
      // Predicated region
      $region85: #{tpu_custom_call.1} parent=5 // pred_check
        %p528 = pneg %p527
      $region86: #{tpu_custom_call.1} parent=5 // pred_check_branch
        %530 = sbr.rel (%p528) target = $region88
      $region87: #{tpu_custom_call.1} parent=5 // pred_region
        // Predicated region
        $region89: #{tpu_custom_call.1} parent=87 // pred_check
          %p531 = pneg %p48
        $region90: #{tpu_custom_call.1} parent=87 // pred_check_branch
          %533 = sbr.rel (%p531) target = $region92
        $region91: #{tpu_custom_call.1} parent=87 // pred_region
          %p534 = scmp.lt.s32.totalorder %s28, 1
          %s535 = scalar_select %p534, %s28, 1
          %s536 = smul.addr %s535, 2
          %s537 = smul.addr %s536, 8
          %s538 = scalar_lea.vmem %s0, %s537
        $region92: #{tpu_custom_call.1} parent=87 // pred_fallthru
          _
      $region88: #{tpu_custom_call.1} parent=5 // pred_fallthru
        _
      %p539 = scmp.le.s32.totalorder 1, %s28
      %p540 = scmp.lt.s32.totalorder %s28, 3
      %p541 = pnand %p539, %p540
      %p542 = pneg %p541
      // Predicated region
      $region93: #{tpu_custom_call.1} parent=5 // pred_check
        _
      $region94: #{tpu_custom_call.1} parent=5 // pred_check_branch
        %544 = sbr.rel (%p541) target = $region96
      $region95: #{tpu_custom_call.1} parent=5 // pred_region
        %s545 = ssub.s32 %s28, 1
        %p546 = scmp.lt.s32.totalorder %s33, 1
        %s547 = scalar_select %p546, %s33, 1
        %s548 = smul.addr %s547, 2
        %s549 = smul.addr %s548, 8
        %s550 = scalar_lea.vmem %s0, %s549
        %p551 = pneg %p54
        %p552 = pneg %p51
        %p553 = pneg %p75
        %p554 = pneg %p72
        %p555 = pneg %p96
        %p556 = pneg %p93
        %p557 = pneg %p117
        %p558 = pneg %p114
        %p559 = pneg %p138
        %p560 = pneg %p135
        %p561 = pneg %p159
        %p562 = pneg %p156
        %p563 = pneg %p180
        %p564 = pneg %p177
        %p565 = pneg %p201
        %p566 = pneg %p198
        %p567 = pneg %p222
        %p568 = pneg %p219
        %p569 = pneg %p243
        %p570 = pneg %p240
        %p571 = pneg %p264
        %p572 = pneg %p261
        %p573 = pneg %p285
        %p574 = pneg %p282
        %p575 = pneg %p306
        %p576 = pneg %p303
        %p577 = pneg %p327
        %p578 = pneg %p324
        %p579 = pneg %p348
        %p580 = pneg %p345
        %p581 = pneg %p369
        %p582 = pneg %p366
        %p583 = pneg %p390
        %p584 = pneg %p387
        %p585 = pneg %p411
        %p586 = pneg %p408
        %p587 = pneg %p432
        %p588 = pneg %p429
        %p589 = pneg %p458
        %p590 = pneg %p455
        %s591 = sand.u32 %s445, 1
        %s592 = scalar_lea.sflag [#allocation3], %s591
        %s593 = sand.u32 %s445, 1
        %s594 = smul.addr %s593, 16
        %s595 = scalar_lea.vmem [#allocation2], %s594
        %p596 = scmp.lt.s32.totalorder %s33, 1
        %s597 = scalar_select %p596, %s33, 1
        %s598 = smul.addr %s597, 2
        %s599 = smul.addr %s598, 8
        %s600 = scalar_lea.vmem %s0, %s599
        %v602 = vld [vmem:[%s600] sm:$0xff]
        %v603 = vld [vmem:[%s600 + $0x8] sm:$0xff]
        %v604 = vlaneseq
        %v605 = vshrl.u32 %v604, 7
        %v606 = vadd.s32 %v605, 8
        %vm607 = vcmp.ne.s32.totalorder %v605, 0
        %vm608 = vcmp.ne.s32.totalorder %v606, 0
        %v609 = vsel %vm607, 1, 0
        %v610 = vsel %vm608, 1, 0
        %v611 = vcvt.s32.f32 %v609
        %v612 = vcvt.s32.f32 %v610
        %vm613 = vcmp.ne.s32.totalorder %v605, 15
        %vm614 = vcmp.ne.s32.totalorder %v606, 15
        %v615 = vsel %vm613, 1, 0
        %v616 = vsel %vm614, 1, 0
        %v617 = vcvt.s32.f32 %v615
        %v618 = vcvt.s32.f32 %v616
        %v619 = vld [vmem:[%s2] sm:$0x7]
        %v620 = vld [vmem:[%s4] sm:$0x7]
        %v621 = vrot.slane %v602, 7
        %v622 = vrot.slane %v603, 7
        %vm623 = vcmp.lt.s32.totalorder %v605, 1
        %v624 = vsel %vm623, %v621, %v622
        %v625 = vsel %vm623, %v622, %v621
        %v626 = vmul.f32 %v625, %v611
        %v627 = vmul.f32 %v624, %v612
        %v628 = vrot.slane %v602, 1
        %v629 = vrot.slane %v603, 1
        %vm630 = vcmp.lt.s32.totalorder %v605, 7
        %v631 = vsel %vm630, %v628, %v629
        %v632 = vsel %vm630, %v629, %v628
        %v633 = vmul.f32 %v631, %v617
        %v634 = vmul.f32 %v632, %v618
        %637 = vrot.lane.b32.xlu0 %v602, 4
        %v638 = vpop.permute.xlu0 %637
        %639 = vrot.lane.b32.xlu0 %v603, 4
        %v640 = vpop.permute.xlu0 %639
        %645 = vrot.lane.b32.xlu0 %v633, 8
        %v646 = vpop.permute.xlu0 %645
        %647 = vrot.lane.b32.xlu0 %v634, 8
        %v648 = vpop.permute.xlu0 %647
        %vm651 = vcmask 31744
        %v652 = vsel %vm651, %v626, %v638
        %v653 = vsel %vm651, %v627, %v640
        %vm654 = vcmask 64512
        %v655 = vsel %vm654, %v652, %v646
        %v656 = vsel %vm654, %v653, %v648
        %v657 = vpack.c.bf16 %v656, %v655
        %v658 = vld [vmem:[%s1] sm:$0xf]
        %v659 = vld [vmem:[%s1 + $0x4] sm:$0x3]
        %v660 = vlaneseq
        %v661 = vshrl.u32 %v660, 7
        %v662 = vsub.s32 0, %v661
        %v663 = vrot.slane %v619, %v662
        %v666 = vunpack.c.l.b16 %v658
        %v667 = vunpack.c.l.b16 %v659
        %v668 = vpack.c.b16 %v667, %v666
        %vm669 = vcmask 97280
        %v671 = vsel %vm669, %v657, 0
        %vm673 = vcmask 1045504
        %v675 = vsel %vm673, %v668, 0
        %677 = vmatprep.subr.bf16.mxu0 0
        %678 = vmatpush1.bf16.msra.mxu0 0
        %679 = vmatprep.subr.bf16.mxu0 0
        %680 = vmatpush1.bf16.msra.mxu0 0
        %681 = vmatprep.subr.bf16.mxu0 0
        %682 = vmatpush1.bf16.msra.mxu0 0
        %683 = vmatprep.subr.bf16.mxu0 0
        %684 = vmatpush1.bf16.msra.mxu0 0
        %685 = vmatprep.subr.bf16.mxu0 0
        %686 = vmatpush1.bf16.msra.mxu0 0
        %687 = vmatprep.subr.bf16.mxu0 0
        %688 = vmatpush1.bf16.msra.mxu0 0
        %689 = vmatprep.subr.bf16.mxu0 0
        %690 = vmatpush1.bf16.msra.mxu0 0
        %691 = vmatprep.subr.bf16.mxu0 0
        %692 = vmatpush1.bf16.msra.mxu0 %v675
        %693 = vmatprep.subr.bf16.mxu0 0
        %694 = vmatpush2.bf16.msra.mxu0 0
        %695 = vmatprep.subr.bf16.mxu0 0
        %696 = vmatpush2.bf16.msra.mxu0 0
        %697 = vmatprep.subr.bf16.mxu0 0
        %698 = vmatpush2.bf16.msra.mxu0 0
        %699 = vmatprep.subr.bf16.mxu0 0
        %700 = vmatpush2.bf16.msra.mxu0 0
        %701 = vmatprep.subr.bf16.mxu0 0
        %702 = vmatpush2.bf16.msra.mxu0 0
        %703 = vmatprep.subr.bf16.mxu0 0
        %704 = vmatpush2.bf16.msra.mxu0 0
        %705 = vmatprep.subr.bf16.mxu0 0
        %706 = vmatpush2.bf16.msra.mxu0 0
        %707 = vmatprep.subr.bf16.mxu0 0
        %708 = vmatpush2.bf16.msra.mxu0 0
        %709 = vmatprep.mubr.bf16.mxu0 0
        %710 = vmatmul.mubr.bf16.gmra.mxu0 %v671
        %v711 = vpop.f32.mrf.mxu0
        %v712 = vadd.f32 %v663, %v711
        %v713 = vpop.f32.mrf.mxu0
        %v714 = vpop.f32.mrf.mxu0
        %v715 = vadd.f32 %v663, %v714
        %v716 = vpop.f32.mrf.mxu0
        %717 = vdwg.mxu0
        %v718 = vsel %vm654, %v712, 0.0
        %719 = vadd.xlane.f32.xlu0 %v718
        %v720 = vpop.xlane.xlu0 %719
        %v721 = vsel %vm654, %v715, 0.0
        %722 = vadd.xlane.f32.xlu0 %v721
        %v723 = vpop.xlane.xlu0 %722
        %v724 = vrcp.pop 8.0
        %v725 = vmul.f32 %v720, %v724
        %v726 = vmul.f32 %v723, %v724
        %v727 = vsub.f32 %v712, %v725
        %v728 = vsub.f32 %v715, %v726
        %v729 = vmul.f32 %v727, %v727
        %v730 = vmul.f32 %v728, %v728
        %v731 = vsel %vm654, %v729, 0.0
        %732 = vadd.xlane.f32.xlu0 %v731
        %v733 = vpop.xlane.xlu0 %732
        %v734 = vsel %vm654, %v730, 0.0
        %735 = vadd.xlane.f32.xlu0 %v734
        %v736 = vpop.xlane.xlu0 %735
        %v737 = vmul.f32 %v733, %v724
        %v738 = vmul.f32 %v736, %v724
        %v739 = vadd.f32 %v737, 1e-05
        %v740 = vadd.f32 %v738, 1e-05
        %v741 = vrsqrt.pop %v739
        %v742 = vrsqrt.pop %v740
        %v743 = vmul.f32 %v727, %v741
        %v744 = vmul.f32 %v728, %v742
        %v745 = vlaneseq
        %v746 = vshrl.u32 %v745, 7
        %v747 = vsub.s32 1, %v746
        %v748 = vrot.slane %v619, %v747
        %v749 = vmul.f32 %v743, %v748
        %v750 = vmul.f32 %v744, %v748
        %v751 = vlaneseq
        %v752 = vshrl.u32 %v751, 7
        %v753 = vsub.s32 2, %v752
        %v754 = vrot.slane %v619, %v753
        %v755 = vadd.f32 %v749, %v754
        %v756 = vadd.f32 %v750, %v754
        %v757 = vmax.f32 %v755, 0.0
        %v758 = vmax.f32 %v756, 0.0
        %v759 = vrot.slane %v757, 7
        %v760 = vrot.slane %v758, 7
        %v761 = vsel %vm623, %v759, %v760
        %v762 = vsel %vm623, %v760, %v759
        %v763 = vmul.f32 %v762, %v611
        %v764 = vmul.f32 %v761, %v612
        %v765 = vrot.slane %v757, 1
        %v766 = vrot.slane %v758, 1
        %v767 = vsel %vm630, %v765, %v766
        %v768 = vsel %vm630, %v766, %v765
        %v769 = vmul.f32 %v767, %v617
        %v770 = vmul.f32 %v768, %v618
        %773 = vrot.lane.b32.xlu0 %v757, 8
        %v774 = vpop.permute.xlu0 %773
        %775 = vrot.lane.b32.xlu0 %v758, 8
        %v776 = vpop.permute.xlu0 %775
        %781 = vrot.lane.b32.xlu0 %v769, 16
        %v782 = vpop.permute.xlu0 %781
        %783 = vrot.lane.b32.xlu0 %v770, 16
        %v784 = vpop.permute.xlu0 %783
        %v787 = vsel %vm654, %v763, %v774
        %v788 = vsel %vm654, %v764, %v776
        %vm789 = vcmask 130048
        %v790 = vsel %vm789, %v787, %v782
        %v791 = vsel %vm789, %v788, %v784
        %v792 = vpack.c.bf16 %v791, %v790
        %v793 = vld [vmem:[%s3] sm:$0xf]
        %v794 = vld [vmem:[%s3 + $0x4] sm:$0xf]
        %v795 = vld [vmem:[%s3 + $0x8] sm:$0xf]
        %v796 = vlaneseq
        %v797 = vshrl.u32 %v796, 7
        %v798 = vsub.s32 0, %v797
        %v799 = vrot.slane %v620, %v798
        %v803 = vunpack.c.l.b16 %v793
        %v804 = vunpack.c.l.b16 %v794
        %v805 = vunpack.c.l.b16 %v795
        %v806 = vpack.c.b16 %v804, %v803
        %v807 = vpack.c.b16 %v805, %v805
        %vm809 = vcmask 195584
        %v811 = vsel %vm809, %v792, 0
        %vm813 = vcmask 1043456
        %v815 = vsel %vm813, %v807, 0
        %817 = vmatprep.subr.bf16.mxu0 0
        %818 = vmatpush1.bf16.msra.mxu0 0
        %819 = vmatprep.subr.bf16.mxu0 0
        %820 = vmatpush1.bf16.msra.mxu0 0
        %821 = vmatprep.subr.bf16.mxu0 0
        %822 = vmatpush1.bf16.msra.mxu0 0
        %823 = vmatprep.subr.bf16.mxu0 0
        %824 = vmatpush1.bf16.msra.mxu0 0
        %825 = vmatprep.subr.bf16.mxu0 0
        %826 = vmatpush1.bf16.msra.mxu0 0
        %827 = vmatprep.subr.bf16.mxu0 0
        %828 = vmatpush1.bf16.msra.mxu0 0
        %829 = vmatprep.subr.bf16.mxu0 0
        %830 = vmatpush1.bf16.msra.mxu0 %v815
        %831 = vmatprep.subr.bf16.mxu0 0
        %832 = vmatpush1.bf16.msra.mxu0 %v806
        %833 = vmatprep.subr.bf16.mxu0 0
        %834 = vmatpush2.bf16.msra.mxu0 0
        %835 = vmatprep.subr.bf16.mxu0 0
        %836 = vmatpush2.bf16.msra.mxu0 0
        %837 = vmatprep.subr.bf16.mxu0 0
        %838 = vmatpush2.bf16.msra.mxu0 0
        %839 = vmatprep.subr.bf16.mxu0 0
        %840 = vmatpush2.bf16.msra.mxu0 0
        %841 = vmatprep.subr.bf16.mxu0 0
        %842 = vmatpush2.bf16.msra.mxu0 0
        %843 = vmatprep.subr.bf16.mxu0 0
        %844 = vmatpush2.bf16.msra.mxu0 0
        %845 = vmatprep.subr.bf16.mxu0 0
        %846 = vmatpush2.bf16.msra.mxu0 0
        %847 = vmatprep.subr.bf16.mxu0 0
        %848 = vmatpush2.bf16.msra.mxu0 0
        %849 = vmatprep.mubr.bf16.mxu0 0
        %850 = vmatmul.mubr.bf16.gmra.mxu0 %v811
        %v851 = vpop.f32.mrf.mxu0
        %v852 = vadd.f32 %v799, %v851
        %v853 = vpop.f32.mrf.mxu0
        %v854 = vpop.f32.mrf.mxu0
        %v855 = vadd.f32 %v799, %v854
        %v856 = vpop.f32.mrf.mxu0
        %857 = vdwg.mxu0
        %v858 = vsel %vm654, %v852, 0.0
        %859 = vadd.xlane.f32.xlu0 %v858
        %v860 = vpop.xlane.xlu0 %859
        %v861 = vsel %vm654, %v855, 0.0
        %862 = vadd.xlane.f32.xlu0 %v861
        %v863 = vpop.xlane.xlu0 %862
        %v864 = vmul.f32 %v860, %v724
        %v865 = vmul.f32 %v863, %v724
        %v866 = vsub.f32 %v852, %v864
        %v867 = vsub.f32 %v855, %v865
        %v868 = vmul.f32 %v866, %v866
        %v869 = vmul.f32 %v867, %v867
        %v870 = vsel %vm654, %v868, 0.0
        %871 = vadd.xlane.f32.xlu0 %v870
        %v872 = vpop.xlane.xlu0 %871
        %v873 = vsel %vm654, %v869, 0.0
        %874 = vadd.xlane.f32.xlu0 %v873
        %v875 = vpop.xlane.xlu0 %874
        %v876 = vmul.f32 %v872, %v724
        %v877 = vmul.f32 %v875, %v724
        %v878 = vadd.f32 %v876, 1e-05
        %v879 = vadd.f32 %v877, 1e-05
        %v880 = vrsqrt.pop %v878
        %v881 = vrsqrt.pop %v879
        %v882 = vmul.f32 %v866, %v880
        %v883 = vmul.f32 %v867, %v881
        %v884 = vlaneseq
        %v885 = vshrl.u32 %v884, 7
        %v886 = vsub.s32 1, %v885
        %v887 = vrot.slane %v620, %v886
        %v888 = vmul.f32 %v882, %v887
        %v889 = vmul.f32 %v883, %v887
        %v890 = vlaneseq
        %v891 = vshrl.u32 %v890, 7
        %v892 = vsub.s32 2, %v891
        %v893 = vrot.slane %v620, %v892
        %v894 = vadd.f32 %v888, %v893
        %v895 = vadd.f32 %v889, %v893
        %v896 = vpack.c.bf16 %v603, %v602
        %v897 = vld [vmem:[%s5] sm:$0x3]
        %v899 = vsel %vm651, %v896, 0
        %vm901 = vcmask 1041408
        %v903 = vsel %vm901, %v897, 0
        %905 = vmatprep.subr.bf16.mxu0 0
        %906 = vmatpush1.bf16.msra.mxu0 0
        %907 = vmatprep.subr.bf16.mxu0 0
        %908 = vmatpush1.bf16.msra.mxu0 0
        %909 = vmatprep.subr.bf16.mxu0 0
        %910 = vmatpush1.bf16.msra.mxu0 0
        %911 = vmatprep.subr.bf16.mxu0 0
        %912 = vmatpush1.bf16.msra.mxu0 0
        %913 = vmatprep.subr.bf16.mxu0 0
        %914 = vmatpush1.bf16.msra.mxu0 0
        %915 = vmatprep.subr.bf16.mxu0 0
        %916 = vmatpush1.bf16.msra.mxu0 0
        %917 = vmatprep.subr.bf16.mxu0 0
        %918 = vmatpush1.bf16.msra.mxu0 0
        %919 = vmatprep.subr.bf16.mxu0 0
        %920 = vmatpush1.bf16.msra.mxu0 %v903
        %921 = vmatprep.subr.bf16.mxu0 0
        %922 = vmatpush2.bf16.msra.mxu0 0
        %923 = vmatprep.subr.bf16.mxu0 0
        %924 = vmatpush2.bf16.msra.mxu0 0
        %925 = vmatprep.subr.bf16.mxu0 0
        %926 = vmatpush2.bf16.msra.mxu0 0
        %927 = vmatprep.subr.bf16.mxu0 0
        %928 = vmatpush2.bf16.msra.mxu0 0
        %929 = vmatprep.subr.bf16.mxu0 0
        %930 = vmatpush2.bf16.msra.mxu0 0
        %931 = vmatprep.subr.bf16.mxu0 0
        %932 = vmatpush2.bf16.msra.mxu0 0
        %933 = vmatprep.subr.bf16.mxu0 0
        %934 = vmatpush2.bf16.msra.mxu0 0
        %935 = vmatprep.subr.bf16.mxu0 0
        %936 = vmatpush2.bf16.msra.mxu0 0
        %937 = vmatprep.mubr.bf16.mxu0 0
        %938 = vmatmul.mubr.bf16.gmra.mxu0 %v899
        %v939 = vpop.f32.mrf.mxu0
        %v940 = vadd.f32 %v894, %v939
        %v941 = vpop.f32.mrf.mxu0
        %v942 = vpop.f32.mrf.mxu0
        %v943 = vadd.f32 %v895, %v942
        %v944 = vpop.f32.mrf.mxu0
        %945 = vdwg.mxu0
        %v946 = vmax.f32 %v940, 0.0
        %v947 = vmax.f32 %v943, 0.0
        %v948 = vld [vmem:[%s7] sm:$0x7]
        %v949 = vld [vmem:[%s9] sm:$0x7]
        %v950 = vrot.slane %v946, 7
        %v951 = vrot.slane %v947, 7
        %v952 = vsel %vm623, %v950, %v951
        %v953 = vsel %vm623, %v951, %v950
        %v954 = vmul.f32 %v953, %v611
        %v955 = vmul.f32 %v952, %v612
        %v956 = vrot.slane %v946, 1
        %v957 = vrot.slane %v947, 1
        %v958 = vsel %vm630, %v956, %v957
        %v959 = vsel %vm630, %v957, %v956
        %v960 = vmul.f32 %v958, %v617
        %v961 = vmul.f32 %v959, %v618
        %964 = vrot.lane.b32.xlu0 %v946, 8
        %v965 = vpop.permute.xlu0 %964
        %966 = vrot.lane.b32.xlu0 %v947, 8
        %v967 = vpop.permute.xlu0 %966
        %972 = vrot.lane.b32.xlu0 %v960, 16
        %v973 = vpop.permute.xlu0 %972
        %974 = vrot.lane.b32.xlu0 %v961, 16
        %v975 = vpop.permute.xlu0 %974
        %v978 = vsel %vm654, %v954, %v965
        %v979 = vsel %vm654, %v955, %v967
        %v980 = vsel %vm789, %v978, %v973
        %v981 = vsel %vm789, %v979, %v975
        %v982 = vpack.c.bf16 %v981, %v980
        %v983 = vld [vmem:[%s6] sm:$0xf]
        %v984 = vld [vmem:[%s6 + $0x4] sm:$0xf]
        %v985 = vld [vmem:[%s6 + $0x8] sm:$0xf]
        %v986 = vlaneseq
        %v987 = vshrl.u32 %v986, 7
        %v988 = vsub.s32 0, %v987
        %v989 = vrot.slane %v948, %v988
        %v993 = vunpack.c.l.b16 %v983
        %v994 = vunpack.c.l.b16 %v984
        %v995 = vunpack.c.l.b16 %v985
        %v996 = vpack.c.b16 %v994, %v993
        %v997 = vpack.c.b16 %v995, %v995
        %v1000 = vsel %vm809, %v982, 0
        %v1003 = vsel %vm813, %v997, 0
        %1005 = vmatprep.subr.bf16.mxu0 0
        %1006 = vmatpush1.bf16.msra.mxu0 0
        %1007 = vmatprep.subr.bf16.mxu0 0
        %1008 = vmatpush1.bf16.msra.mxu0 0
        %1009 = vmatprep.subr.bf16.mxu0 0
        %1010 = vmatpush1.bf16.msra.mxu0 0
        %1011 = vmatprep.subr.bf16.mxu0 0
        %1012 = vmatpush1.bf16.msra.mxu0 0
        %1013 = vmatprep.subr.bf16.mxu0 0
        %1014 = vmatpush1.bf16.msra.mxu0 0
        %1015 = vmatprep.subr.bf16.mxu0 0
        %1016 = vmatpush1.bf16.msra.mxu0 0
        %1017 = vmatprep.subr.bf16.mxu0 0
        %1018 = vmatpush1.bf16.msra.mxu0 %v1003
        %1019 = vmatprep.subr.bf16.mxu0 0
        %1020 = vmatpush1.bf16.msra.mxu0 %v996
        %1021 = vmatprep.subr.bf16.mxu0 0
        %1022 = vmatpush2.bf16.msra.mxu0 0
        %1023 = vmatprep.subr.bf16.mxu0 0
        %1024 = vmatpush2.bf16.msra.mxu0 0
        %1025 = vmatprep.subr.bf16.mxu0 0
        %1026 = vmatpush2.bf16.msra.mxu0 0
        %1027 = vmatprep.subr.bf16.mxu0 0
        %1028 = vmatpush2.bf16.msra.mxu0 0
        %1029 = vmatprep.subr.bf16.mxu0 0
        %1030 = vmatpush2.bf16.msra.mxu0 0
        %1031 = vmatprep.subr.bf16.mxu0 0
        %1032 = vmatpush2.bf16.msra.mxu0 0
        %1033 = vmatprep.subr.bf16.mxu0 0
        %1034 = vmatpush2.bf16.msra.mxu0 0
        %1035 = vmatprep.subr.bf16.mxu0 0
        %1036 = vmatpush2.bf16.msra.mxu0 0
        %1037 = vmatprep.mubr.bf16.mxu0 0
        %1038 = vmatmul.mubr.bf16.gmra.mxu0 %v1000
        %v1039 = vpop.f32.mrf.mxu0
        %v1040 = vadd.f32 %v989, %v1039
        %v1041 = vpop.f32.mrf.mxu0
        %v1042 = vpop.f32.mrf.mxu0
        %v1043 = vadd.f32 %v989, %v1042
        %v1044 = vpop.f32.mrf.mxu0
        %1045 = vdwg.mxu0
        %v1046 = vsel %vm654, %v1040, 0.0
        %1047 = vadd.xlane.f32.xlu0 %v1046
        %v1048 = vpop.xlane.xlu0 %1047
        %v1049 = vsel %vm654, %v1043, 0.0
        %1050 = vadd.xlane.f32.xlu0 %v1049
        %v1051 = vpop.xlane.xlu0 %1050
        %v1052 = vmul.f32 %v1048, %v724
        %v1053 = vmul.f32 %v1051, %v724
        %v1054 = vsub.f32 %v1040, %v1052
        %v1055 = vsub.f32 %v1043, %v1053
        %v1056 = vmul.f32 %v1054, %v1054
        %v1057 = vmul.f32 %v1055, %v1055
        %v1058 = vsel %vm654, %v1056, 0.0
        %1059 = vadd.xlane.f32.xlu0 %v1058
        %v1060 = vpop.xlane.xlu0 %1059
        %v1061 = vsel %vm654, %v1057, 0.0
        %1062 = vadd.xlane.f32.xlu0 %v1061
        %v1063 = vpop.xlane.xlu0 %1062
        %v1064 = vmul.f32 %v1060, %v724
        %v1065 = vmul.f32 %v1063, %v724
        %v1066 = vadd.f32 %v1064, 1e-05
        %v1067 = vadd.f32 %v1065, 1e-05
        %v1068 = vrsqrt.pop %v1066
        %v1069 = vrsqrt.pop %v1067
        %v1070 = vmul.f32 %v1054, %v1068
        %v1071 = vmul.f32 %v1055, %v1069
        %v1072 = vlaneseq
        %v1073 = vshrl.u32 %v1072, 7
        %v1074 = vsub.s32 1, %v1073
        %v1075 = vrot.slane %v948, %v1074
        %v1076 = vmul.f32 %v1070, %v1075
        %v1077 = vmul.f32 %v1071, %v1075
        %v1078 = vlaneseq
        %v1079 = vshrl.u32 %v1078, 7
        %v1080 = vsub.s32 2, %v1079
        %v1081 = vrot.slane %v948, %v1080
        %v1082 = vadd.f32 %v1076, %v1081
        %v1083 = vadd.f32 %v1077, %v1081
        %v1084 = vmax.f32 %v1082, 0.0
        %v1085 = vmax.f32 %v1083, 0.0
        %v1086 = vrot.slane %v1084, 7
        %v1087 = vrot.slane %v1085, 7
        %v1088 = vsel %vm623, %v1086, %v1087
        %v1089 = vsel %vm623, %v1087, %v1086
        %v1090 = vmul.f32 %v1089, %v611
        %v1091 = vmul.f32 %v1088, %v612
        %v1092 = vrot.slane %v1084, 1
        %v1093 = vrot.slane %v1085, 1
        %v1094 = vsel %vm630, %v1092, %v1093
        %v1095 = vsel %vm630, %v1093, %v1092
        %v1096 = vmul.f32 %v1094, %v617
        %v1097 = vmul.f32 %v1095, %v618
        %1100 = vrot.lane.b32.xlu0 %v1084, 8
        %v1101 = vpop.permute.xlu0 %1100
        %1102 = vrot.lane.b32.xlu0 %v1085, 8
        %v1103 = vpop.permute.xlu0 %1102
        %1108 = vrot.lane.b32.xlu0 %v1096, 16
        %v1109 = vpop.permute.xlu0 %1108
        %1110 = vrot.lane.b32.xlu0 %v1097, 16
        %v1111 = vpop.permute.xlu0 %1110
        %v1114 = vsel %vm654, %v1090, %v1101
        %v1115 = vsel %vm654, %v1091, %v1103
        %v1116 = vsel %vm789, %v1114, %v1109
        %v1117 = vsel %vm789, %v1115, %v1111
        %v1118 = vpack.c.bf16 %v1117, %v1116
        %v1119 = vld [vmem:[%s8] sm:$0xf]
        %v1120 = vld [vmem:[%s8 + $0x4] sm:$0xf]
        %v1121 = vld [vmem:[%s8 + $0x8] sm:$0xf]
        %v1122 = vlaneseq
        %v1123 = vshrl.u32 %v1122, 7
        %v1124 = vsub.s32 0, %v1123
        %v1125 = vrot.slane %v949, %v1124
        %v1129 = vunpack.c.l.b16 %v1119
        %v1130 = vunpack.c.l.b16 %v1120
        %v1131 = vunpack.c.l.b16 %v1121
        %v1132 = vpack.c.b16 %v1130, %v1129
        %v1133 = vpack.c.b16 %v1131, %v1131
        %v1136 = vsel %vm809, %v1118, 0
        %v1139 = vsel %vm813, %v1133, 0
        %1141 = vmatprep.subr.bf16.mxu0 0
        %1142 = vmatpush1.bf16.msra.mxu0 0
        %1143 = vmatprep.subr.bf16.mxu0 0
        %1144 = vmatpush1.bf16.msra.mxu0 0
        %1145 = vmatprep.subr.bf16.mxu0 0
        %1146 = vmatpush1.bf16.msra.mxu0 0
        %1147 = vmatprep.subr.bf16.mxu0 0
        %1148 = vmatpush1.bf16.msra.mxu0 0
        %1149 = vmatprep.subr.bf16.mxu0 0
        %1150 = vmatpush1.bf16.msra.mxu0 0
        %1151 = vmatprep.subr.bf16.mxu0 0
        %1152 = vmatpush1.bf16.msra.mxu0 0
        %1153 = vmatprep.subr.bf16.mxu0 0
        %1154 = vmatpush1.bf16.msra.mxu0 %v1139
        %1155 = vmatprep.subr.bf16.mxu0 0
        %1156 = vmatpush1.bf16.msra.mxu0 %v1132
        %1157 = vmatprep.subr.bf16.mxu0 0
        %1158 = vmatpush2.bf16.msra.mxu0 0
        %1159 = vmatprep.subr.bf16.mxu0 0
        %1160 = vmatpush2.bf16.msra.mxu0 0
        %1161 = vmatprep.subr.bf16.mxu0 0
        %1162 = vmatpush2.bf16.msra.mxu0 0
        %1163 = vmatprep.subr.bf16.mxu0 0
        %1164 = vmatpush2.bf16.msra.mxu0 0
        %1165 = vmatprep.subr.bf16.mxu0 0
        %1166 = vmatpush2.bf16.msra.mxu0 0
        %1167 = vmatprep.subr.bf16.mxu0 0
        %1168 = vmatpush2.bf16.msra.mxu0 0
        %1169 = vmatprep.subr.bf16.mxu0 0
        %1170 = vmatpush2.bf16.msra.mxu0 0
        %1171 = vmatprep.subr.bf16.mxu0 0
        %1172 = vmatpush2.bf16.msra.mxu0 0
        %1173 = vmatprep.mubr.bf16.mxu0 0
        %1174 = vmatmul.mubr.bf16.gmra.mxu0 %v1136
        %v1175 = vpop.f32.mrf.mxu0
        %v1176 = vadd.f32 %v1125, %v1175
        %v1177 = vpop.f32.mrf.mxu0
        %v1178 = vpop.f32.mrf.mxu0
        %v1179 = vadd.f32 %v1125, %v1178
        %v1180 = vpop.f32.mrf.mxu0
        %1181 = vdwg.mxu0
        %v1182 = vsel %vm654, %v1176, 0.0
        %1183 = vadd.xlane.f32.xlu0 %v1182
        %v1184 = vpop.xlane.xlu0 %1183
        %v1185 = vsel %vm654, %v1179, 0.0
        %1186 = vadd.xlane.f32.xlu0 %v1185
        %v1187 = vpop.xlane.xlu0 %1186
        %v1188 = vmul.f32 %v1184, %v724
        %v1189 = vmul.f32 %v1187, %v724
        %v1190 = vsub.f32 %v1176, %v1188
        %v1191 = vsub.f32 %v1179, %v1189
        %v1192 = vmul.f32 %v1190, %v1190
        %v1193 = vmul.f32 %v1191, %v1191
        %v1194 = vsel %vm654, %v1192, 0.0
        %1195 = vadd.xlane.f32.xlu0 %v1194
        %v1196 = vpop.xlane.xlu0 %1195
        %v1197 = vsel %vm654, %v1193, 0.0
        %1198 = vadd.xlane.f32.xlu0 %v1197
        %v1199 = vpop.xlane.xlu0 %1198
        %v1200 = vmul.f32 %v1196, %v724
        %v1201 = vmul.f32 %v1199, %v724
        %v1202 = vadd.f32 %v1200, 1e-05
        %v1203 = vadd.f32 %v1201, 1e-05
        %v1204 = vrsqrt.pop %v1202
        %v1205 = vrsqrt.pop %v1203
        %v1206 = vmul.f32 %v1190, %v1204
        %v1207 = vmul.f32 %v1191, %v1205
        %v1208 = vlaneseq
        %v1209 = vshrl.u32 %v1208, 7
        %v1210 = vsub.s32 1, %v1209
        %v1211 = vrot.slane %v949, %v1210
        %v1212 = vmul.f32 %v1206, %v1211
        %v1213 = vmul.f32 %v1207, %v1211
        %v1214 = vlaneseq
        %v1215 = vshrl.u32 %v1214, 7
        %v1216 = vsub.s32 2, %v1215
        %v1217 = vrot.slane %v949, %v1216
        %v1218 = vadd.f32 %v1212, %v1217
        %v1219 = vadd.f32 %v1213, %v1217
        %v1220 = vadd.f32 %v946, %v1218
        %v1221 = vadd.f32 %v947, %v1219
        %v1222 = vmax.f32 %v1220, 0.0
        %v1223 = vmax.f32 %v1221, 0.0
        %v1224 = vld [vmem:[%s11] sm:$0x7]
        %v1225 = vld [vmem:[%s13] sm:$0x7]
        %v1226 = vrot.slane %v1222, 7
        %v1227 = vrot.slane %v1223, 7
        %v1228 = vsel %vm623, %v1226, %v1227
        %v1229 = vsel %vm623, %v1227, %v1226
        %v1230 = vmul.f32 %v1229, %v611
        %v1231 = vmul.f32 %v1228, %v612
        %v1232 = vrot.slane %v1222, 1
        %v1233 = vrot.slane %v1223, 1
        %v1234 = vsel %vm630, %v1232, %v1233
        %v1235 = vsel %vm630, %v1233, %v1232
        %v1236 = vmul.f32 %v1234, %v617
        %v1237 = vmul.f32 %v1235, %v618
        %1240 = vrot.lane.b32.xlu0 %v1222, 8
        %v1241 = vpop.permute.xlu0 %1240
        %1242 = vrot.lane.b32.xlu0 %v1223, 8
        %v1243 = vpop.permute.xlu0 %1242
        %1248 = vrot.lane.b32.xlu0 %v1236, 16
        %v1249 = vpop.permute.xlu0 %1248
        %1250 = vrot.lane.b32.xlu0 %v1237, 16
        %v1251 = vpop.permute.xlu0 %1250
        %v1254 = vsel %vm654, %v1230, %v1241
        %v1255 = vsel %vm654, %v1231, %v1243
        %v1256 = vsel %vm789, %v1254, %v1249
        %v1257 = vsel %vm789, %v1255, %v1251
        %v1258 = vpack.c.bf16 %v1257, %v1256
        %v1259 = vld [vmem:[%s10] sm:$0xf]
        %v1260 = vld [vmem:[%s10 + $0x4] sm:$0xf]
        %v1261 = vld [vmem:[%s10 + $0x8] sm:$0xf]
        %v1262 = vlaneseq
        %v1263 = vshrl.u32 %v1262, 7
        %v1264 = vsub.s32 0, %v1263
        %v1265 = vrot.slane %v1224, %v1264
        %v1269 = vunpack.c.l.b16 %v1259
        %v1270 = vunpack.c.l.b16 %v1260
        %v1271 = vunpack.c.l.b16 %v1261
        %v1272 = vpack.c.b16 %v1270, %v1269
        %v1273 = vpack.c.b16 %v1271, %v1271
        %v1276 = vsel %vm809, %v1258, 0
        %v1279 = vsel %vm813, %v1273, 0
        %1281 = vmatprep.subr.bf16.mxu0 0
        %1282 = vmatpush1.bf16.msra.mxu0 0
        %1283 = vmatprep.subr.bf16.mxu0 0
        %1284 = vmatpush1.bf16.msra.mxu0 0
        %1285 = vmatprep.subr.bf16.mxu0 0
        %1286 = vmatpush1.bf16.msra.mxu0 0
        %1287 = vmatprep.subr.bf16.mxu0 0
        %1288 = vmatpush1.bf16.msra.mxu0 0
        %1289 = vmatprep.subr.bf16.mxu0 0
        %1290 = vmatpush1.bf16.msra.mxu0 0
        %1291 = vmatprep.subr.bf16.mxu0 0
        %1292 = vmatpush1.bf16.msra.mxu0 0
        %1293 = vmatprep.subr.bf16.mxu0 0
        %1294 = vmatpush1.bf16.msra.mxu0 %v1279
        %1295 = vmatprep.subr.bf16.mxu0 0
        %1296 = vmatpush1.bf16.msra.mxu0 %v1272
        %1297 = vmatprep.subr.bf16.mxu0 0
        %1298 = vmatpush2.bf16.msra.mxu0 0
        %1299 = vmatprep.subr.bf16.mxu0 0
        %1300 = vmatpush2.bf16.msra.mxu0 0
        %1301 = vmatprep.subr.bf16.mxu0 0
        %1302 = vmatpush2.bf16.msra.mxu0 0
        %1303 = vmatprep.subr.bf16.mxu0 0
        %1304 = vmatpush2.bf16.msra.mxu0 0
        %1305 = vmatprep.subr.bf16.mxu0 0
        %1306 = vmatpush2.bf16.msra.mxu0 0
        %1307 = vmatprep.subr.bf16.mxu0 0
        %1308 = vmatpush2.bf16.msra.mxu0 0
        %1309 = vmatprep.subr.bf16.mxu0 0
        %1310 = vmatpush2.bf16.msra.mxu0 0
        %1311 = vmatprep.subr.bf16.mxu0 0
        %1312 = vmatpush2.bf16.msra.mxu0 0
        %1313 = vmatprep.mubr.bf16.mxu0 0
        %1314 = vmatmul.mubr.bf16.gmra.mxu0 %v1276
        %v1315 = vpop.f32.mrf.mxu0
        %v1316 = vadd.f32 %v1265, %v1315
        %v1317 = vpop.f32.mrf.mxu0
        %v1318 = vpop.f32.mrf.mxu0
        %v1319 = vadd.f32 %v1265, %v1318
        %v1320 = vpop.f32.mrf.mxu0
        %1321 = vdwg.mxu0
        %v1322 = vsel %vm789, %v1316, 0.0
        %1323 = vadd.xlane.f32.xlu0 %v1322
        %v1324 = vpop.xlane.xlu0 %1323
        %v1325 = vsel %vm789, %v1319, 0.0
        %1326 = vadd.xlane.f32.xlu0 %v1325
        %v1327 = vpop.xlane.xlu0 %1326
        %v1328 = vrcp.pop 16.0
        %v1329 = vmul.f32 %v1324, %v1328
        %v1330 = vmul.f32 %v1327, %v1328
        %v1331 = vsub.f32 %v1316, %v1329
        %v1332 = vsub.f32 %v1319, %v1330
        %v1333 = vmul.f32 %v1331, %v1331
        %v1334 = vmul.f32 %v1332, %v1332
        %v1335 = vsel %vm789, %v1333, 0.0
        %1336 = vadd.xlane.f32.xlu0 %v1335
        %v1337 = vpop.xlane.xlu0 %1336
        %v1338 = vsel %vm789, %v1334, 0.0
        %1339 = vadd.xlane.f32.xlu0 %v1338
        %v1340 = vpop.xlane.xlu0 %1339
        %v1341 = vmul.f32 %v1337, %v1328
        %v1342 = vmul.f32 %v1340, %v1328
        %v1343 = vadd.f32 %v1341, 1e-05
        %v1344 = vadd.f32 %v1342, 1e-05
        %v1345 = vrsqrt.pop %v1343
        %v1346 = vrsqrt.pop %v1344
        %v1347 = vmul.f32 %v1331, %v1345
        %v1348 = vmul.f32 %v1332, %v1346
        %v1349 = vlaneseq
        %v1350 = vshrl.u32 %v1349, 7
        %v1351 = vsub.s32 1, %v1350
        %v1352 = vrot.slane %v1224, %v1351
        %v1353 = vmul.f32 %v1347, %v1352
        %v1354 = vmul.f32 %v1348, %v1352
        %v1355 = vlaneseq
        %v1356 = vshrl.u32 %v1355, 7
        %v1357 = vsub.s32 2, %v1356
        %v1358 = vrot.slane %v1224, %v1357
        %v1359 = vadd.f32 %v1353, %v1358
        %v1360 = vadd.f32 %v1354, %v1358
        %v1361 = vmax.f32 %v1359, 0.0
        %v1362 = vmax.f32 %v1360, 0.0
        %v1363 = vrot.slane %v1361, 7
        %v1364 = vrot.slane %v1362, 7
        %v1365 = vsel %vm623, %v1363, %v1364
        %v1366 = vsel %vm623, %v1364, %v1363
        %v1367 = vmul.f32 %v1366, %v611
        %v1368 = vmul.f32 %v1365, %v612
        %v1369 = vrot.slane %v1361, 1
        %v1370 = vrot.slane %v1362, 1
        %v1371 = vsel %vm630, %v1369, %v1370
        %v1372 = vsel %vm630, %v1370, %v1369
        %v1373 = vmul.f32 %v1371, %v617
        %v1374 = vmul.f32 %v1372, %v618
        %1377 = vrot.lane.b32.xlu0 %v1361, 16
        %v1378 = vpop.permute.xlu0 %1377
        %1379 = vrot.lane.b32.xlu0 %v1362, 16
        %v1380 = vpop.permute.xlu0 %1379
        %1385 = vrot.lane.b32.xlu0 %v1373, 32
        %v1386 = vpop.permute.xlu0 %1385
        %1387 = vrot.lane.b32.xlu0 %v1374, 32
        %v1388 = vpop.permute.xlu0 %1387
        %v1391 = vsel %vm789, %v1367, %v1378
        %v1392 = vsel %vm789, %v1368, %v1380
        %vm1393 = vcmask 261120
        %v1394 = vsel %vm1393, %v1391, %v1386
        %v1395 = vsel %vm1393, %v1392, %v1388
        %v1396 = vpack.c.bf16 %v1395, %v1394
        %v1397 = vld [vmem:[%s12] sm:$0xf]
        %v1398 = vld [vmem:[%s12 + $0x4] sm:$0xf]
        %v1399 = vld [vmem:[%s12 + $0x8] sm:$0xf]
        %v1400 = vld [vmem:[%s12 + $0xc] sm:$0xf]
        %v1401 = vld [vmem:[%s12 + $0x10] sm:$0xf]
        %v1402 = vld [vmem:[%s12 + $0x14] sm:$0xf]
        %v1403 = vlaneseq
        %v1404 = vshrl.u32 %v1403, 7
        %v1405 = vsub.s32 0, %v1404
        %v1406 = vrot.slane %v1225, %v1405
        %v1413 = vunpack.c.l.b16 %v1397
        %v1414 = vunpack.c.l.b16 %v1398
        %v1415 = vunpack.c.l.b16 %v1399
        %v1416 = vunpack.c.l.b16 %v1400
        %v1417 = vunpack.c.l.b16 %v1401
        %v1418 = vunpack.c.l.b16 %v1402
        %v1419 = vpack.c.b16 %v1414, %v1413
        %v1420 = vpack.c.b16 %v1416, %v1415
        %v1421 = vpack.c.b16 %v1418, %v1417
        %vm1425 = vcmask 392192
        %v1427 = vsel %vm1425, %v1396, 0
        %1429 = vmatprep.subr.bf16.mxu0 0
        %1430 = vmatpush1.bf16.msra.mxu0 0
        %1431 = vmatprep.subr.bf16.mxu0 0
        %1432 = vmatpush1.bf16.msra.mxu0 0
        %1433 = vmatprep.subr.bf16.mxu0 0
        %1434 = vmatpush1.bf16.msra.mxu0 0
        %1435 = vmatprep.subr.bf16.mxu0 0
        %1436 = vmatpush1.bf16.msra.mxu0 0
        %1437 = vmatprep.subr.bf16.mxu0 0
        %1438 = vmatpush1.bf16.msra.mxu0 0
        %1439 = vmatprep.subr.bf16.mxu0 0
        %1440 = vmatpush1.bf16.msra.mxu0 %v1421
        %1441 = vmatprep.subr.bf16.mxu0 0
        %1442 = vmatpush1.bf16.msra.mxu0 %v1420
        %1443 = vmatprep.subr.bf16.mxu0 0
        %1444 = vmatpush1.bf16.msra.mxu0 %v1419
        %1445 = vmatprep.subr.bf16.mxu0 0
        %1446 = vmatpush2.bf16.msra.mxu0 0
        %1447 = vmatprep.subr.bf16.mxu0 0
        %1448 = vmatpush2.bf16.msra.mxu0 0
        %1449 = vmatprep.subr.bf16.mxu0 0
        %1450 = vmatpush2.bf16.msra.mxu0 0
        %1451 = vmatprep.subr.bf16.mxu0 0
        %1452 = vmatpush2.bf16.msra.mxu0 0
        %1453 = vmatprep.subr.bf16.mxu0 0
        %1454 = vmatpush2.bf16.msra.mxu0 0
        %1455 = vmatprep.subr.bf16.mxu0 0
        %1456 = vmatpush2.bf16.msra.mxu0 0
        %1457 = vmatprep.subr.bf16.mxu0 0
        %1458 = vmatpush2.bf16.msra.mxu0 0
        %1459 = vmatprep.subr.bf16.mxu0 0
        %1460 = vmatpush2.bf16.msra.mxu0 0
        %1461 = vmatprep.mubr.bf16.mxu0 0
        %1462 = vmatmul.mubr.bf16.gmra.mxu0 %v1427
        %v1463 = vpop.f32.mrf.mxu0
        %v1464 = vadd.f32 %v1406, %v1463
        %v1465 = vpop.f32.mrf.mxu0
        %v1466 = vpop.f32.mrf.mxu0
        %v1467 = vadd.f32 %v1406, %v1466
        %v1468 = vpop.f32.mrf.mxu0
        %1469 = vdwg.mxu0
        %v1470 = vsel %vm789, %v1464, 0.0
        %1471 = vadd.xlane.f32.xlu0 %v1470
        %v1472 = vpop.xlane.xlu0 %1471
        %v1473 = vsel %vm789, %v1467, 0.0
        %1474 = vadd.xlane.f32.xlu0 %v1473
        %v1475 = vpop.xlane.xlu0 %1474
        %v1476 = vmul.f32 %v1472, %v1328
        %v1477 = vmul.f32 %v1475, %v1328
        %v1478 = vsub.f32 %v1464, %v1476
        %v1479 = vsub.f32 %v1467, %v1477
        %v1480 = vmul.f32 %v1478, %v1478
        %v1481 = vmul.f32 %v1479, %v1479
        %v1482 = vsel %vm789, %v1480, 0.0
        %1483 = vadd.xlane.f32.xlu0 %v1482
        %v1484 = vpop.xlane.xlu0 %1483
        %v1485 = vsel %vm789, %v1481, 0.0
        %1486 = vadd.xlane.f32.xlu0 %v1485
        %v1487 = vpop.xlane.xlu0 %1486
        %v1488 = vmul.f32 %v1484, %v1328
        %v1489 = vmul.f32 %v1487, %v1328
        %v1490 = vadd.f32 %v1488, 1e-05
        %v1491 = vadd.f32 %v1489, 1e-05
        %v1492 = vrsqrt.pop %v1490
        %v1493 = vrsqrt.pop %v1491
        %v1494 = vmul.f32 %v1478, %v1492
        %v1495 = vmul.f32 %v1479, %v1493
        %v1496 = vlaneseq
        %v1497 = vshrl.u32 %v1496, 7
        %v1498 = vsub.s32 1, %v1497
        %v1499 = vrot.slane %v1225, %v1498
        %v1500 = vmul.f32 %v1494, %v1499
        %v1501 = vmul.f32 %v1495, %v1499
        %v1502 = vlaneseq
        %v1503 = vshrl.u32 %v1502, 7
        %v1504 = vsub.s32 2, %v1503
        %v1505 = vrot.slane %v1225, %v1504
        %v1506 = vadd.f32 %v1500, %v1505
        %v1507 = vadd.f32 %v1501, %v1505
        %v1508 = vpack.c.bf16 %v1223, %v1222
        %v1509 = vld [vmem:[%s14] sm:$0xf]
        %v1511 = vsel %vm654, %v1508, 0
        %v1514 = vsel %vm813, %v1509, 0
        %1516 = vmatprep.subr.bf16.mxu0 0
        %1517 = vmatpush1.bf16.msra.mxu0 0
        %1518 = vmatprep.subr.bf16.mxu0 0
        %1519 = vmatpush1.bf16.msra.mxu0 0
        %1520 = vmatprep.subr.bf16.mxu0 0
        %1521 = vmatpush1.bf16.msra.mxu0 0
        %1522 = vmatprep.subr.bf16.mxu0 0
        %1523 = vmatpush1.bf16.msra.mxu0 0
        %1524 = vmatprep.subr.bf16.mxu0 0
        %1525 = vmatpush1.bf16.msra.mxu0 0
        %1526 = vmatprep.subr.bf16.mxu0 0
        %1527 = vmatpush1.bf16.msra.mxu0 0
        %1528 = vmatprep.subr.bf16.mxu0 0
        %1529 = vmatpush1.bf16.msra.mxu0 0
        %1530 = vmatprep.subr.bf16.mxu0 0
        %1531 = vmatpush1.bf16.msra.mxu0 %v1514
        %1532 = vmatprep.subr.bf16.mxu0 0
        %1533 = vmatpush2.bf16.msra.mxu0 0
        %1534 = vmatprep.subr.bf16.mxu0 0
        %1535 = vmatpush2.bf16.msra.mxu0 0
        %1536 = vmatprep.subr.bf16.mxu0 0
        %1537 = vmatpush2.bf16.msra.mxu0 0
        %1538 = vmatprep.subr.bf16.mxu0 0
        %1539 = vmatpush2.bf16.msra.mxu0 0
        %1540 = vmatprep.subr.bf16.mxu0 0
        %1541 = vmatpush2.bf16.msra.mxu0 0
        %1542 = vmatprep.subr.bf16.mxu0 0
        %1543 = vmatpush2.bf16.msra.mxu0 0
        %1544 = vmatprep.subr.bf16.mxu0 0
        %1545 = vmatpush2.bf16.msra.mxu0 0
        %1546 = vmatprep.subr.bf16.mxu0 0
        %1547 = vmatpush2.bf16.msra.mxu0 0
        %1548 = vmatprep.mubr.bf16.mxu0 0
        %1549 = vmatmul.mubr.bf16.gmra.mxu0 %v1511
        %v1550 = vpop.f32.mrf.mxu0
        %v1551 = vadd.f32 %v1506, %v1550
        %v1552 = vpop.f32.mrf.mxu0
        %v1553 = vpop.f32.mrf.mxu0
        %v1554 = vadd.f32 %v1507, %v1553
        %v1555 = vpop.f32.mrf.mxu0
        %1556 = vdwg.mxu0
        %v1557 = vmax.f32 %v1551, 0.0
        %v1558 = vmax.f32 %v1554, 0.0
        %v1559 = vpack.c.bf16 %v1558, %v1557
        %v1560 = vld [vmem:[%s15] sm:$0xf]
        %v1561 = vld [vmem:[%s15 + $0x4] sm:$0xf]
        %v1562 = vld [vmem:[%s16] sm:$0x1]
        %v1564 = vlaneseq
        %v1565 = vshrl.u32 %v1564, 7
        %v1566 = vsub.s32 0, %v1565
        %v1567 = vrot.slane %v1562, %v1566
        %v1571 = vunpack.c.l.b16 %v1560
        %v1572 = vunpack.c.l.b16 %v1561
        %v1573 = vpack.c.b16 %v1572, %v1571
        %v1576 = vsel %vm789, %v1559, 0
        %1578 = vmatprep.subr.bf16.mxu0 0
        %1579 = vmatpush1.bf16.msra.mxu0 0
        %1580 = vmatprep.subr.bf16.mxu0 0
        %1581 = vmatpush1.bf16.msra.mxu0 0
        %1582 = vmatprep.subr.bf16.mxu0 0
        %1583 = vmatpush1.bf16.msra.mxu0 0
        %1584 = vmatprep.subr.bf16.mxu0 0
        %1585 = vmatpush1.bf16.msra.mxu0 0
        %1586 = vmatprep.subr.bf16.mxu0 0
        %1587 = vmatpush1.bf16.msra.mxu0 0
        %1588 = vmatprep.subr.bf16.mxu0 0
        %1589 = vmatpush1.bf16.msra.mxu0 0
        %1590 = vmatprep.subr.bf16.mxu0 0
        %1591 = vmatpush1.bf16.msra.mxu0 0
        %1592 = vmatprep.subr.bf16.mxu0 0
        %1593 = vmatpush1.bf16.msra.mxu0 %v1573
        %1594 = vmatprep.subr.bf16.mxu0 0
        %1595 = vmatpush2.bf16.msra.mxu0 0
        %1596 = vmatprep.subr.bf16.mxu0 0
        %1597 = vmatpush2.bf16.msra.mxu0 0
        %1598 = vmatprep.subr.bf16.mxu0 0
        %1599 = vmatpush2.bf16.msra.mxu0 0
        %1600 = vmatprep.subr.bf16.mxu0 0
        %1601 = vmatpush2.bf16.msra.mxu0 0
        %1602 = vmatprep.subr.bf16.mxu0 0
        %1603 = vmatpush2.bf16.msra.mxu0 0
        %1604 = vmatprep.subr.bf16.mxu0 0
        %1605 = vmatpush2.bf16.msra.mxu0 0
        %1606 = vmatprep.subr.bf16.mxu0 0
        %1607 = vmatpush2.bf16.msra.mxu0 0
        %1608 = vmatprep.subr.bf16.mxu0 0
        %1609 = vmatpush2.bf16.msra.mxu0 0
        %1610 = vmatprep.mubr.bf16.mxu0 0
        %1611 = vmatmul.mubr.bf16.gmra.mxu0 %v1576
        %v1612 = vpop.f32.mrf.mxu0
        %v1613 = vadd.f32 %v1567, %v1612
        %v1614 = vpop.f32.mrf.mxu0
        %v1615 = vpop.f32.mrf.mxu0
        %v1616 = vadd.f32 %v1567, %v1615
        %v1617 = vpop.f32.mrf.mxu0
        %1618 = vdwg.mxu0
        %v1619 = vmax.f32 %v1613, 0.0
        %v1620 = vmax.f32 %v1616, 0.0
        %v1621 = vpack.c.bf16 %v1620, %v1619
        %v1622 = vld [vmem:[%s17] sm:$0xf]
        %v1623 = vld [vmem:[%s17 + $0x4] sm:$0xf]
        %v1624 = vld [vmem:[%s18] sm:$0x1]
        %v1626 = vlaneseq
        %v1627 = vshrl.u32 %v1626, 7
        %v1628 = vsub.s32 0, %v1627
        %v1629 = vrot.slane %v1624, %v1628
        %v1633 = vunpack.c.l.b16 %v1622
        %v1634 = vunpack.c.l.b16 %v1623
        %v1635 = vpack.c.b16 %v1634, %v1633
        %v1638 = vsel %vm789, %v1621, 0
        %1640 = vmatprep.subr.bf16.mxu0 0
        %1641 = vmatpush1.bf16.msra.mxu0 0
        %1642 = vmatprep.subr.bf16.mxu0 0
        %1643 = vmatpush1.bf16.msra.mxu0 0
        %1644 = vmatprep.subr.bf16.mxu0 0
        %1645 = vmatpush1.bf16.msra.mxu0 0
        %1646 = vmatprep.subr.bf16.mxu0 0
        %1647 = vmatpush1.bf16.msra.mxu0 0
        %1648 = vmatprep.subr.bf16.mxu0 0
        %1649 = vmatpush1.bf16.msra.mxu0 0
        %1650 = vmatprep.subr.bf16.mxu0 0
        %1651 = vmatpush1.bf16.msra.mxu0 0
        %1652 = vmatprep.subr.bf16.mxu0 0
        %1653 = vmatpush1.bf16.msra.mxu0 0
        %1654 = vmatprep.subr.bf16.mxu0 0
        %1655 = vmatpush1.bf16.msra.mxu0 %v1635
        %1656 = vmatprep.subr.bf16.mxu0 0
        %1657 = vmatpush2.bf16.msra.mxu0 0
        %1658 = vmatprep.subr.bf16.mxu0 0
        %1659 = vmatpush2.bf16.msra.mxu0 0
        %1660 = vmatprep.subr.bf16.mxu0 0
        %1661 = vmatpush2.bf16.msra.mxu0 0
        %1662 = vmatprep.subr.bf16.mxu0 0
        %1663 = vmatpush2.bf16.msra.mxu0 0
        %1664 = vmatprep.subr.bf16.mxu0 0
        %1665 = vmatpush2.bf16.msra.mxu0 0
        %1666 = vmatprep.subr.bf16.mxu0 0
        %1667 = vmatpush2.bf16.msra.mxu0 0
        %1668 = vmatprep.subr.bf16.mxu0 0
        %1669 = vmatpush2.bf16.msra.mxu0 0
        %1670 = vmatprep.subr.bf16.mxu0 0
        %1671 = vmatpush2.bf16.msra.mxu0 0
        %1672 = vmatprep.mubr.bf16.mxu0 0
        %1673 = vmatmul.mubr.bf16.gmra.mxu0 %v1638
        %v1674 = vpop.f32.mrf.mxu0
        %v1675 = vadd.f32 %v1629, %v1674
        %v1676 = vpop.f32.mrf.mxu0
        %v1677 = vpop.f32.mrf.mxu0
        %v1678 = vadd.f32 %v1629, %v1677
        %v1679 = vpop.f32.mrf.mxu0
        %1680 = vdwg.mxu0
        %1681 = vst [vmem:[%s595] sm:$0xff] %v1675
        %1682 = vst [vmem:[%s595 + $0x8] sm:$0xff] %v1678
        %s1683 = sand.u32 %s445, 1
        %s1684 = scalar_lea.sflag [#allocation3], %s1683
        %s1685 = sand.u32 %s445, 1
        %s1686 = smul.addr %s1685, 16
        %s1687 = scalar_lea.vmem [#allocation2], %s1686
        // Predicated region
        $region97: #{tpu_custom_call.1} parent=95 // pred_check
          %p1688 = pneg %p455
        $region98: #{tpu_custom_call.1} parent=95 // pred_check_branch
          %1690 = sbr.rel (%p1688) target = $region100
        $region99: #{tpu_custom_call.1} parent=95 // pred_region
          %s1692 = ssub.s32 256, 256
          %1693 = vsyncadd %s1684, %s1692
          %s1694 = smul.addr %s33, 2
          %s1695 = smul.addr %s1694, 128
          %s1696 = scalar_lea.hbm %s19, %s1695
          %s1697 = sshll.u32 %s1687, 4
          %s1698 = int_to_ptr.vmem [resolvable:$true] %s1697
          %1703 = dma.vmem_to_hbm [thread:$0]  %s1698, 256, %s1696, %s1684, 128, 128, 8
        $region100: #{tpu_custom_call.1} parent=95 // pred_fallthru
          _
      $region96: #{tpu_custom_call.1} parent=5 // pred_fallthru
        _
      %p1704 = scmp.le.s32.totalorder 2, %s28
      // Predicated region
      $region101: #{tpu_custom_call.1} parent=5 // pred_check
        %p1705 = pneg %p1704
      $region102: #{tpu_custom_call.1} parent=5 // pred_check_branch
        %1707 = sbr.rel (%p1705) target = $region104
      $region103: #{tpu_custom_call.1} parent=5 // pred_region
        %s1708 = ssub.s32 %s28, 2
        // Predicated region
        $region105: #{tpu_custom_call.1} parent=103 // pred_check
          %p1709 = pneg %p461
        $region106: #{tpu_custom_call.1} parent=103 // pred_check_branch
          %1711 = sbr.rel (%p1709) target = $region108
        $region107: #{tpu_custom_call.1} parent=103 // pred_region
          %s1712 = sand.u32 %s446, 1
          %s1713 = scalar_lea.sflag [#allocation3], %s1712
          %s1714 = sand.u32 %s446, 1
          %s1715 = smul.addr %s1714, 16
          %s1716 = scalar_lea.vmem [#allocation2], %s1715
          %1717 = dma.done %s1713, 256
        $region108: #{tpu_custom_call.1} parent=103 // pred_fallthru
          _
      $region104: #{tpu_custom_call.1} parent=5 // pred_fallthru
        _
    $region6: #{tpu_custom_call.1} parent=1 // loop_footer
      %s32 = sadd.s32 1, %s28
    $region7: #{tpu_custom_call.1} parent=1 // loop_footer_branch
      %27 = sbr.rel target = $region3
    $region8: #{tpu_custom_call.1} parent=1 // loop_exit
      _
    %1718 = vsyncpa [#allocation3], 1
    %s1719 = scalar_lea.sflag [#allocation3], 1
    %1720 = vsyncpa %s1719, 1

</llo_original>
